<compile_context>
chip_gen: v7x
topology: tpu7x:2x2x1
jax: 0.10.0
libtpu: 0.0.40
codegen_flags: <defaults>
</compile_context>

<pallas_src>
import jax
import jax.numpy as jnp
from jax import lax
from jax.experimental import pallas as pl
from jax.experimental.pallas import tpu as pltpu


def _round_up(x, m):
    return (x + m - 1) // m * m


def encoder_lstm_kernel(lens_ref, x0_hbm, wx_ref, wh_ref, b_ref,
                        h_out_ref, c_out_ref,
                        ybuf_ref, xproj_ref, dma_sem):
    """One grid step == one LSTM layer over the whole sequence.

    lens_ref:  VMEM (B_pad, 1) int32     per-sequence valid lengths
    x0_hbm:    ANY  (T, B_pad, D) bf16   embedded layer-0 input (zero padded)
    wx_ref:    VMEM (1, D, 4H) bf16      input->gates  (i|f|g|o), pad rows 0
    wh_ref:    VMEM (1, H, 4H) bf16      hidden->gates (i|f|g|o)
    b_ref:     VMEM (1, 1, 4H) f32       bias_ih + bias_hh
    h_out_ref: VMEM (1, B_pad, H) f32    final hidden for this layer
    c_out_ref: VMEM (1, B_pad, H) f32    final cell for this layer
    ybuf_ref:  VMEM scratch (T, B_pad, D) bf16, in-place layer activations
    xproj_ref: VMEM scratch (T, B_pad, 4H) f32, hoisted input projection
    dma_sem:   DMA semaphore for the layer-0 HBM->VMEM copy
    """
    layer = pl.program_id(0)
    T, B, D = ybuf_ref.shape
    G = xproj_ref.shape[2]
    H = h_out_ref.shape[2]

    # Layer 0: DMA embedded inputs straight into the in-place activation
    # buffer (no double-buffered input block, no VMEM->VMEM copy). Each layer
    # consumes ybuf and overwrites it with its own hidden outputs, which are
    # exactly the next layer's inputs.
    @pl.when(layer == 0)
    def _():
        cp = pltpu.make_async_copy(x0_hbm, ybuf_ref, dma_sem)
        cp.start()
        cp.wait()

    lens = lens_ref[...]                      # (B_pad, 1) int32 (hoisted)
    wx = wx_ref[0]                            # (D, 4H) bf16     (hoisted)
    wh = wh_ref[0]                            # (H, 4H) bf16     (hoisted)
    bias = b_ref[0]                           # (1, 4H) f32      (hoisted)

    # Hoisted input projection: ONE (T*B, D) @ (D, 4H) matmul + bias per
    # layer, outside the serial recurrence (good MXU row fill).
    x_flat = ybuf_ref[...].reshape(T * B, D)                       # bf16
    xz = jnp.dot(x_flat, wx, preferred_element_type=jnp.float32) + bias
    xproj_ref[...] = xz.reshape(T, B, G)                           # f32

    h0 = jnp.zeros((B, H), jnp.float32)
    c0 = jnp.zeros((B, H), jnp.float32)

    def step(t, carry):
        h_prev, c_prev = carry                # (B_pad, H) f32
        # Recurrent path: single small matmul + precomputed input projection.
        z = xproj_ref[t] + jnp.dot(h_prev.astype(jnp.bfloat16), wh,
                                   preferred_element_type=jnp.float32)

        i = jax.nn.sigmoid(z[:, 0 * H:1 * H])
        f = jax.nn.sigmoid(z[:, 1 * H:2 * H])
        g = jnp.tanh(z[:, 2 * H:3 * H])
        o = jax.nn.sigmoid(z[:, 3 * H:4 * H])

        c_new = f * c_prev + i * g
        h_new = o * jnp.tanh(c_new)

        # packed-sequence semantics: hold state once t >= src_len[b]
        valid = lens > t                      # (B_pad, 1) bool
        h = jnp.where(valid, h_new, h_prev)
        c = jnp.where(valid, c_new, c_prev)

        # Store this layer's output back into the activation buffer.
        h_store = h.astype(jnp.bfloat16)
        if D > H:
            # Only the H real columns; stale pad columns (H..D) are harmless
            # because Wx rows H..D are exactly zero for layers > 0.
            ybuf_ref[t, :, :H] = h_store
        else:
            ybuf_ref[t] = h_store
        return (h, c)

    # Static trip count + unroll: masked tail steps are no-ops, and unrolling
    # lets step t+1's xproj load / EUP work overlap step t's MXU latency.
    unroll = True if T <= 16 else 4
    h_fin, c_fin = lax.fori_loop(0, T, step, (h0, c0), unroll=unroll)
    h_out_ref[0] = h_fin
    c_out_ref[0] = c_fin


def encoder_lstm(lens, x0, wx_all, wh_all, b_all):
    """All LSTM layers in one pallas_call; grid axis = layer (sequential)."""
    L, D, G = wx_all.shape
    H = G // 4
    T, B_pad, _ = x0.shape

    # Explicit VMEM budget (review item): resident scratch + double-buffered
    # per-layer weight blocks + outputs, with slack.
    vmem_need = (T * B_pad * D * 2                      # ybuf (bf16)
                 + T * B_pad * G * 4                    # xproj (f32)
                 + 2 * (D * G * 2 + H * G * 2 + G * 4)  # Wx/Wh/b (2 bufs)
                 + 2 * B_pad * 4                        # lens
                 + 2 * 2 * B_pad * H * 4)               # h/c out (2 bufs)
    vmem_limit = int(min(max(2 * vmem_need + (1 << 20), 16 << 20), 48 << 20))
    # TODO(synk): for long sequences on v7x (64 MiB VMEM), tile the time axis
    # with a double-buffered DMA pipeline instead of whole-sequence residency.

    grid_spec = pltpu.PrefetchScalarGridSpec(
        num_scalar_prefetch=0,
        grid=(L,),
        in_specs=[
            pl.BlockSpec((B_pad, 1), lambda l: (0, 0)),       # lens
            pl.BlockSpec(memory_space=pl.ANY),                # x0 (manual DMA)
            pl.BlockSpec((1, D, G), lambda l: (l, 0, 0)),     # Wx per layer
            pl.BlockSpec((1, H, G), lambda l: (l, 0, 0)),     # Wh per layer
            pl.BlockSpec((1, 1, G), lambda l: (l, 0, 0)),     # bias per layer
        ],
        out_specs=(
            pl.BlockSpec((1, B_pad, H), lambda l: (l, 0, 0)),  # hidden
            pl.BlockSpec((1, B_pad, H), lambda l: (l, 0, 0)),  # cell
        ),
        scratch_shapes=[
            pltpu.VMEM((T, B_pad, D), jnp.bfloat16),   # in-place activations
            pltpu.VMEM((T, B_pad, G), jnp.float32),    # hoisted input proj
            pltpu.SemaphoreType.DMA(()),               # layer-0 DMA semaphore
        ],
    )
    return pl.pallas_call(
        encoder_lstm_kernel,
        out_shape=(jax.ShapeDtypeStruct((L, B_pad, H), jnp.float32),
                   jax.ShapeDtypeStruct((L, B_pad, H), jnp.float32)),
        grid_spec=grid_spec,
        compiler_params=pltpu.CompilerParams(
            dimension_semantics=("arbitrary",),        # layers are sequential
            vmem_limit_bytes=vmem_limit),
    )(lens, x0, wx_all, wh_all, b_all)


def init_encoder_params(key, input_dim, emb_dim, hid_dim, n_layers):
    """Weights pre-stacked for the kernel: per-layer Wx (D,4H), Wh (H,4H),
    bias (1,4H) in PyTorch gate order (i,f,g,o). Wx input dim is zero-padded
    to D = max(emb_dim, hid_dim) so all layers share one stacked array.
    INVARIANT (kernel relies on it): Wx rows in_dim..D are exactly zero."""
    D = max(emb_dim, hid_dim)
    G = 4 * hid_dim
    keys = jax.random.split(key, 1 + 4 * n_layers)
    emb_table = 0.1 * jax.random.normal(keys[0], (input_dim, emb_dim),
                                        jnp.float32)
    s = 1.0 / float(hid_dim) ** 0.5
    wx_l, wh_l, b_l = [], [], []
    k = 1
    for l in range(n_layers):
        in_dim = emb_dim if l == 0 else hid_dim
        wih = jax.random.uniform(keys[k], (in_dim, G), jnp.float32, -s, s); k += 1
        whh = jax.random.uniform(keys[k], (hid_dim, G), jnp.float32, -s, s); k += 1
        bih = jax.random.uniform(keys[k], (1, G), jnp.float32, -s, s); k += 1
        bhh = jax.random.uniform(keys[k], (1, G), jnp.float32, -s, s); k += 1
        wx = jnp.zeros((D, G), jnp.float32).at[:in_dim].set(wih)
        wx_l.append(wx)
        wh_l.append(whh)
        b_l.append(bih + bhh)
    return {
        "embedding": emb_table,
        "wx": jnp.stack(wx_l).astype(jnp.bfloat16),   # (L, D, 4H) bf16
        "wh": jnp.stack(wh_l).astype(jnp.bfloat16),   # (L, H, 4H) bf16
        "b": jnp.stack(b_l),                          # (L, 1, 4H) f32
        "emb_dim": emb_dim,
        "hid_dim": hid_dim,
        "n_layers": n_layers,
    }


def encoder_forward(params, src, src_len):
    """src: (T, B) int32 token ids; src_len: (B,) int32 valid lengths
    (sorted descending, as pack_padded_sequence requires)."""
    # Embedding lookup (glue, outside the kernel).
    emb = params["embedding"][src]            # (T, B, E) f32
    # TODO(synk): nn.Dropout (embedding + inter-layer LSTM dropout) is
    # stochastic; implemented as eval-mode identity.

    T, B = src.shape
    E = params["emb_dim"]
    H = params["hid_dim"]
    D = max(E, H)
    B_pad = _round_up(max(B, 8), 8)           # sublane-aligned batch

    x0 = jnp.zeros((T, B_pad, D), jnp.bfloat16)
    x0 = x0.at[:, :B, :E].set(emb.astype(jnp.bfloat16))
    lens = jnp.zeros((B_pad, 1), jnp.int32).at[:B, 0].set(
        src_len.astype(jnp.int32))

    h, c = encoder_lstm(lens, x0, params["wx"], params["wh"], params["b"])
    return h[:, :B, :], c[:, :B, :]


if __name__ == "__main__":
    INPUT_DIM = 50    # vocab size
    EMB_DIM = 32
    HID_DIM = 32
    N_LAYERS = 2
    T, B = 8, 2       # seq_len, batch

    key = jax.random.PRNGKey(0)
    kp, ks = jax.random.split(key)
    params = init_encoder_params(kp, INPUT_DIM, EMB_DIM, HID_DIM, N_LAYERS)

    src = jax.random.randint(ks, (T, B), 1, INPUT_DIM, dtype=jnp.int32)
    src_len = jnp.array([T, 5], dtype=jnp.int32)  # sorted descending

    hidden, cell = encoder_forward(params, src, src_len)
    jax.block_until_ready((hidden, cell))
    assert hidden.shape == (N_LAYERS, B, HID_DIM)
    assert cell.shape == (N_LAYERS, B, HID_DIM)
    assert bool(jnp.all(jnp.isfinite(hidden))) and bool(jnp.all(jnp.isfinite(cell)))
    print("KERNEL_OK")
</pallas_src>

<mosaic_0001>
module attributes {stable_mosaic.version = 11 : i64} {
  func.func @encoder_lstm_kernel(%arg0: i32, %arg1: memref<8x1xi32, #tpu.memory_space<vmem>>, %arg2: memref<8x8x32xbf16, #tpu.memory_space<any>>, %arg3: memref<1x32x128xbf16, #tpu.memory_space<vmem>>, %arg4: memref<1x32x128xbf16, #tpu.memory_space<vmem>>, %arg5: memref<1x1x128xf32, #tpu.memory_space<vmem>>, %arg6: memref<1x8x32xf32, #tpu.memory_space<vmem>>, %arg7: memref<1x8x32xf32, #tpu.memory_space<vmem>>, %arg8: memref<8x8x32xbf16, #tpu.memory_space<vmem>>, %arg9: memref<8x8x128xf32, #tpu.memory_space<vmem>>, %arg10: memref<!tpu.dma_semaphore, #tpu.memory_space<semaphore_mem>>) attributes {dimension_semantics = [#tpu.dimension_semantics<arbitrary>], iteration_bounds = array<i64: 2>, scalar_prefetch = 0 : i64, scratch_operands = 3 : i64, tpu.core_type = #tpu.core_type<tc>, window_params = [{pipeline_mode = #tpu.pipeline_mode<synchronous>, transform_indices = @transform_0, window_bounds = array<i64: 8, 1>}, {}, {transform_indices = @transform_2, window_bounds = array<i64: 1, 32, 128>}, {transform_indices = @transform_3, window_bounds = array<i64: 1, 32, 128>}, {transform_indices = @transform_4, window_bounds = array<i64: 1, 1, 128>}, {transform_indices = @transform_5, window_bounds = array<i64: 1, 8, 32>}, {transform_indices = @transform_6, window_bounds = array<i64: 1, 8, 32>}]} {
    %c0_i32 = arith.constant 0 : i32
    %0 = arith.cmpi eq, %arg0, %c0_i32 : i32
    %1 = arith.extui %0 : i1 to i32
    %c0_i32_0 = arith.constant 0 : i32
    %2 = arith.cmpi ne, %1, %c0_i32_0 : i32
    scf.if %2 {
      tpu.enqueue_dma source(%arg2 : memref<8x8x32xbf16, #tpu.memory_space<any>>) target(%arg8 : memref<8x8x32xbf16, #tpu.memory_space<vmem>>) target_semaphore(%arg10 : memref<!tpu.dma_semaphore, #tpu.memory_space<semaphore_mem>>)
      tpu.wait_dma2 semaphore(%arg10 : memref<!tpu.dma_semaphore, #tpu.memory_space<semaphore_mem>>) src(%arg2 : memref<8x8x32xbf16, #tpu.memory_space<any>>) dst(%arg8 : memref<8x8x32xbf16, #tpu.memory_space<vmem>>)
    } else {
    }
    %c0 = arith.constant 0 : index
    %c0_1 = arith.constant 0 : index
    %3 = vector.load %arg1[%c0, %c0_1] : memref<8x1xi32, #tpu.memory_space<vmem>>, vector<8x1xi32>
    %c0_2 = arith.constant 0 : index
    %c0_3 = arith.constant 0 : index
    %c0_4 = arith.constant 0 : index
    %4 = vector.load %arg3[%c0_2, %c0_3, %c0_4] : memref<1x32x128xbf16, #tpu.memory_space<vmem>>, vector<1x32x128xbf16>
    %5 = vector.shape_cast %4 : vector<1x32x128xbf16> to vector<32x128xbf16>
    %c0_5 = arith.constant 0 : index
    %c0_6 = arith.constant 0 : index
    %c0_7 = arith.constant 0 : index
    %6 = vector.load %arg4[%c0_5, %c0_6, %c0_7] : memref<1x32x128xbf16, #tpu.memory_space<vmem>>, vector<1x32x128xbf16>
    %7 = vector.shape_cast %6 : vector<1x32x128xbf16> to vector<32x128xbf16>
    %c0_8 = arith.constant 0 : index
    %c0_9 = arith.constant 0 : index
    %c0_10 = arith.constant 0 : index
    %8 = vector.load %arg5[%c0_8, %c0_9, %c0_10] : memref<1x1x128xf32, #tpu.memory_space<vmem>>, vector<1x1x128xf32>
    %9 = vector.shape_cast %8 : vector<1x1x128xf32> to vector<1x128xf32>
    %c0_11 = arith.constant 0 : index
    %c0_12 = arith.constant 0 : index
    %c0_13 = arith.constant 0 : index
    %10 = vector.load %arg8[%c0_11, %c0_12, %c0_13] : memref<8x8x32xbf16, #tpu.memory_space<vmem>>, vector<8x8x32xbf16>
    %11 = vector.shape_cast %10 : vector<8x8x32xbf16> to vector<64x32xbf16>
    %cst = arith.constant dense<0.000000e+00> : vector<64x128xf32>
    %12 = tpu.matmul %11, %5, %cst {dimension_numbers = #tpu.dot_dimension_numbers<[1], [0], [0], [1], [0, 0, 1, 1], [], []>} : vector<64x32xbf16>, vector<32x128xbf16>, vector<64x128xf32> -> vector<64x128xf32>
    %13 = vector.broadcast %9 : vector<1x128xf32> to vector<64x128xf32>
    %14 = arith.addf %12, %13 : vector<64x128xf32>
    %15 = vector.shape_cast %14 : vector<64x128xf32> to vector<8x8x128xf32>
    %c0_14 = arith.constant 0 : index
    %c0_15 = arith.constant 0 : index
    %c0_16 = arith.constant 0 : index
    %16 = vector.load %arg9[%c0_14, %c0_15, %c0_16] : memref<8x8x128xf32, #tpu.memory_space<vmem>>, vector<8x8x128xf32>
    tpu.vector_store %arg9[%c0_14, %c0_15, %c0_16], %15 {strides = array<i32>} : memref<8x8x128xf32, #tpu.memory_space<vmem>>, vector<8x8x128xf32>,
    %cst_17 = arith.constant 0.000000e+00 : f32
    %17 = vector.broadcast %cst_17 : f32 to vector<8x32xf32>
    %cst_18 = arith.constant 0.000000e+00 : f32
    %18 = vector.broadcast %cst_18 : f32 to vector<8x32xf32>
    %c0_i32_19 = arith.constant 0 : i32
    %19 = arith.index_cast %c0_i32_19 : i32 to index
    %c0_20 = arith.constant 0 : index
    %c0_21 = arith.constant 0 : index
    %20 = vector.load %arg9[%19, %c0_20, %c0_21] : memref<8x8x128xf32, #tpu.memory_space<vmem>>, vector<1x8x128xf32>
    %21 = vector.shape_cast %20 : vector<1x8x128xf32> to vector<8x128xf32>
    %22 = arith.truncf %17 : vector<8x32xf32> to vector<8x32xbf16>
    %cst_22 = arith.constant dense<0.000000e+00> : vector<8x128xf32>
    %23 = tpu.matmul %22, %7, %cst_22 {dimension_numbers = #tpu.dot_dimension_numbers<[1], [0], [0], [1], [0, 0, 1, 1], [], []>} : vector<8x32xbf16>, vector<32x128xbf16>, vector<8x128xf32> -> vector<8x128xf32>
    %24 = arith.addf %21, %23 : vector<8x128xf32>
    %25 = vector.extract_strided_slice %24 {offsets = [0, 0], sizes = [8, 32], strides = [1, 1]} : vector<8x128xf32> to vector<8x32xf32>
    %26 = arith.negf %25 : vector<8x32xf32>
    %27 = math.exp %26 : vector<8x32xf32>
    %cst_23 = arith.constant 1.000000e+00 : f32
    %28 = vector.broadcast %cst_23 : f32 to vector<8x32xf32>
    %29 = arith.addf %28, %27 : vector<8x32xf32>
    %30 = arith.divf %28, %29 : vector<8x32xf32>
    %31 = vector.extract_strided_slice %24 {offsets = [0, 32], sizes = [8, 32], strides = [1, 1]} : vector<8x128xf32> to vector<8x32xf32>
    %32 = arith.negf %31 : vector<8x32xf32>
    %33 = math.exp %32 : vector<8x32xf32>
    %cst_24 = arith.constant 1.000000e+00 : f32
    %34 = vector.broadcast %cst_24 : f32 to vector<8x32xf32>
    %35 = arith.addf %34, %33 : vector<8x32xf32>
    %36 = arith.divf %34, %35 : vector<8x32xf32>
    %37 = vector.extract_strided_slice %24 {offsets = [0, 64], sizes = [8, 32], strides = [1, 1]} : vector<8x128xf32> to vector<8x32xf32>
    %38 = math.tanh %37 : vector<8x32xf32>
    %39 = vector.extract_strided_slice %24 {offsets = [0, 96], sizes = [8, 32], strides = [1, 1]} : vector<8x128xf32> to vector<8x32xf32>
    %40 = arith.negf %39 : vector<8x32xf32>
    %41 = math.exp %40 : vector<8x32xf32>
    %cst_25 = arith.constant 1.000000e+00 : f32
    %42 = vector.broadcast %cst_25 : f32 to vector<8x32xf32>
    %43 = arith.addf %42, %41 : vector<8x32xf32>
    %44 = arith.divf %42, %43 : vector<8x32xf32>
    %45 = arith.mulf %36, %18 : vector<8x32xf32>
    %46 = arith.mulf %30, %38 : vector<8x32xf32>
    %47 = arith.addf %45, %46 : vector<8x32xf32>
    %48 = math.tanh %47 : vector<8x32xf32>
    %49 = arith.mulf %44, %48 : vector<8x32xf32>
    %50 = vector.broadcast %c0_i32_19 : i32 to vector<8x1xi32>
    %51 = arith.cmpi sgt, %3, %50 : vector<8x1xi32>
    %52 = vector.shape_cast %51 : vector<8x1xi1> to vector<8x1xi1>
    %53 = vector.broadcast %52 : vector<8x1xi1> to vector<8x32xi1>
    %54 = arith.select %53, %49, %17 : vector<8x32xi1>, vector<8x32xf32>
    %55 = vector.shape_cast %51 : vector<8x1xi1> to vector<8x1xi1>
    %56 = vector.broadcast %55 : vector<8x1xi1> to vector<8x32xi1>
    %57 = arith.select %56, %47, %18 : vector<8x32xi1>, vector<8x32xf32>
    %58 = arith.truncf %54 : vector<8x32xf32> to vector<8x32xbf16>
    %59 = arith.index_cast %c0_i32_19 : i32 to index
    %c0_26 = arith.constant 0 : index
    %c0_27 = arith.constant 0 : index
    %60 = vector.load %arg8[%59, %c0_26, %c0_27] : memref<8x8x32xbf16, #tpu.memory_space<vmem>>, vector<1x8x32xbf16>
    %61 = vector.shape_cast %60 : vector<1x8x32xbf16> to vector<8x32xbf16>
    %62 = vector.shape_cast %58 : vector<8x32xbf16> to vector<1x8x32xbf16>
    tpu.vector_store %arg8[%59, %c0_26, %c0_27], %62 {strides = array<i32>} : memref<8x8x32xbf16, #tpu.memory_space<vmem>>, vector<1x8x32xbf16>,
    %c1_i32 = arith.constant 1 : i32
    %63 = arith.index_cast %c1_i32 : i32 to index
    %c0_28 = arith.constant 0 : index
    %c0_29 = arith.constant 0 : index
    %64 = vector.load %arg9[%63, %c0_28, %c0_29] : memref<8x8x128xf32, #tpu.memory_space<vmem>>, vector<1x8x128xf32>
    %65 = vector.shape_cast %64 : vector<1x8x128xf32> to vector<8x128xf32>
    %66 = arith.truncf %54 : vector<8x32xf32> to vector<8x32xbf16>
    %cst_30 = arith.constant dense<0.000000e+00> : vector<8x128xf32>
    %67 = tpu.matmul %66, %7, %cst_30 {dimension_numbers = #tpu.dot_dimension_numbers<[1], [0], [0], [1], [0, 0, 1, 1], [], []>} : vector<8x32xbf16>, vector<32x128xbf16>, vector<8x128xf32> -> vector<8x128xf32>
    %68 = arith.addf %65, %67 : vector<8x128xf32>
    %69 = vector.extract_strided_slice %68 {offsets = [0, 0], sizes = [8, 32], strides = [1, 1]} : vector<8x128xf32> to vector<8x32xf32>
    %70 = arith.negf %69 : vector<8x32xf32>
    %71 = math.exp %70 : vector<8x32xf32>
    %cst_31 = arith.constant 1.000000e+00 : f32
    %72 = vector.broadcast %cst_31 : f32 to vector<8x32xf32>
    %73 = arith.addf %72, %71 : vector<8x32xf32>
    %74 = arith.divf %72, %73 : vector<8x32xf32>
    %75 = vector.extract_strided_slice %68 {offsets = [0, 32], sizes = [8, 32], strides = [1, 1]} : vector<8x128xf32> to vector<8x32xf32>
    %76 = arith.negf %75 : vector<8x32xf32>
    %77 = math.exp %76 : vector<8x32xf32>
    %cst_32 = arith.constant 1.000000e+00 : f32
    %78 = vector.broadcast %cst_32 : f32 to vector<8x32xf32>
    %79 = arith.addf %78, %77 : vector<8x32xf32>
    %80 = arith.divf %78, %79 : vector<8x32xf32>
    %81 = vector.extract_strided_slice %68 {offsets = [0, 64], sizes = [8, 32], strides = [1, 1]} : vector<8x128xf32> to vector<8x32xf32>
    %82 = math.tanh %81 : vector<8x32xf32>
    %83 = vector.extract_strided_slice %68 {offsets = [0, 96], sizes = [8, 32], strides = [1, 1]} : vector<8x128xf32> to vector<8x32xf32>
    %84 = arith.negf %83 : vector<8x32xf32>
    %85 = math.exp %84 : vector<8x32xf32>
    %cst_33 = arith.constant 1.000000e+00 : f32
    %86 = vector.broadcast %cst_33 : f32 to vector<8x32xf32>
    %87 = arith.addf %86, %85 : vector<8x32xf32>
    %88 = arith.divf %86, %87 : vector<8x32xf32>
    %89 = arith.mulf %80, %57 : vector<8x32xf32>
    %90 = arith.mulf %74, %82 : vector<8x32xf32>
    %91 = arith.addf %89, %90 : vector<8x32xf32>
    %92 = math.tanh %91 : vector<8x32xf32>
    %93 = arith.mulf %88, %92 : vector<8x32xf32>
    %94 = vector.broadcast %c1_i32 : i32 to vector<8x1xi32>
    %95 = arith.cmpi sgt, %3, %94 : vector<8x1xi32>
    %96 = vector.shape_cast %95 : vector<8x1xi1> to vector<8x1xi1>
    %97 = vector.broadcast %96 : vector<8x1xi1> to vector<8x32xi1>
    %98 = arith.select %97, %93, %54 : vector<8x32xi1>, vector<8x32xf32>
    %99 = vector.shape_cast %95 : vector<8x1xi1> to vector<8x1xi1>
    %100 = vector.broadcast %99 : vector<8x1xi1> to vector<8x32xi1>
    %101 = arith.select %100, %91, %57 : vector<8x32xi1>, vector<8x32xf32>
    %102 = arith.truncf %98 : vector<8x32xf32> to vector<8x32xbf16>
    %103 = arith.index_cast %c1_i32 : i32 to index
    %c0_34 = arith.constant 0 : index
    %c0_35 = arith.constant 0 : index
    %104 = vector.load %arg8[%103, %c0_34, %c0_35] : memref<8x8x32xbf16, #tpu.memory_space<vmem>>, vector<1x8x32xbf16>
    %105 = vector.shape_cast %104 : vector<1x8x32xbf16> to vector<8x32xbf16>
    %106 = vector.shape_cast %102 : vector<8x32xbf16> to vector<1x8x32xbf16>
    tpu.vector_store %arg8[%103, %c0_34, %c0_35], %106 {strides = array<i32>} : memref<8x8x32xbf16, #tpu.memory_space<vmem>>, vector<1x8x32xbf16>,
    %c2_i32 = arith.constant 2 : i32
    %107 = arith.index_cast %c2_i32 : i32 to index
    %c0_36 = arith.constant 0 : index
    %c0_37 = arith.constant 0 : index
    %108 = vector.load %arg9[%107, %c0_36, %c0_37] : memref<8x8x128xf32, #tpu.memory_space<vmem>>, vector<1x8x128xf32>
    %109 = vector.shape_cast %108 : vector<1x8x128xf32> to vector<8x128xf32>
    %110 = arith.truncf %98 : vector<8x32xf32> to vector<8x32xbf16>
    %cst_38 = arith.constant dense<0.000000e+00> : vector<8x128xf32>
    %111 = tpu.matmul %110, %7, %cst_38 {dimension_numbers = #tpu.dot_dimension_numbers<[1], [0], [0], [1], [0, 0, 1, 1], [], []>} : vector<8x32xbf16>, vector<32x128xbf16>, vector<8x128xf32> -> vector<8x128xf32>
    %112 = arith.addf %109, %111 : vector<8x128xf32>
    %113 = vector.extract_strided_slice %112 {offsets = [0, 0], sizes = [8, 32], strides = [1, 1]} : vector<8x128xf32> to vector<8x32xf32>
    %114 = arith.negf %113 : vector<8x32xf32>
    %115 = math.exp %114 : vector<8x32xf32>
    %cst_39 = arith.constant 1.000000e+00 : f32
    %116 = vector.broadcast %cst_39 : f32 to vector<8x32xf32>
    %117 = arith.addf %116, %115 : vector<8x32xf32>
    %118 = arith.divf %116, %117 : vector<8x32xf32>
    %119 = vector.extract_strided_slice %112 {offsets = [0, 32], sizes = [8, 32], strides = [1, 1]} : vector<8x128xf32> to vector<8x32xf32>
    %120 = arith.negf %119 : vector<8x32xf32>
    %121 = math.exp %120 : vector<8x32xf32>
    %cst_40 = arith.constant 1.000000e+00 : f32
    %122 = vector.broadcast %cst_40 : f32 to vector<8x32xf32>
    %123 = arith.addf %122, %121 : vector<8x32xf32>
    %124 = arith.divf %122, %123 : vector<8x32xf32>
    %125 = vector.extract_strided_slice %112 {offsets = [0, 64], sizes = [8, 32], strides = [1, 1]} : vector<8x128xf32> to vector<8x32xf32>
    %126 = math.tanh %125 : vector<8x32xf32>
    %127 = vector.extract_strided_slice %112 {offsets = [0, 96], sizes = [8, 32], strides = [1, 1]} : vector<8x128xf32> to vector<8x32xf32>
    %128 = arith.negf %127 : vector<8x32xf32>
    %129 = math.exp %128 : vector<8x32xf32>
    %cst_41 = arith.constant 1.000000e+00 : f32
    %130 = vector.broadcast %cst_41 : f32 to vector<8x32xf32>
    %131 = arith.addf %130, %129 : vector<8x32xf32>
    %132 = arith.divf %130, %131 : vector<8x32xf32>
    %133 = arith.mulf %124, %101 : vector<8x32xf32>
    %134 = arith.mulf %118, %126 : vector<8x32xf32>
    %135 = arith.addf %133, %134 : vector<8x32xf32>
    %136 = math.tanh %135 : vector<8x32xf32>
    %137 = arith.mulf %132, %136 : vector<8x32xf32>
    %138 = vector.broadcast %c2_i32 : i32 to vector<8x1xi32>
    %139 = arith.cmpi sgt, %3, %138 : vector<8x1xi32>
    %140 = vector.shape_cast %139 : vector<8x1xi1> to vector<8x1xi1>
    %141 = vector.broadcast %140 : vector<8x1xi1> to vector<8x32xi1>
    %142 = arith.select %141, %137, %98 : vector<8x32xi1>, vector<8x32xf32>
    %143 = vector.shape_cast %139 : vector<8x1xi1> to vector<8x1xi1>
    %144 = vector.broadcast %143 : vector<8x1xi1> to vector<8x32xi1>
    %145 = arith.select %144, %135, %101 : vector<8x32xi1>, vector<8x32xf32>
    %146 = arith.truncf %142 : vector<8x32xf32> to vector<8x32xbf16>
    %147 = arith.index_cast %c2_i32 : i32 to index
    %c0_42 = arith.constant 0 : index
    %c0_43 = arith.constant 0 : index
    %148 = vector.load %arg8[%147, %c0_42, %c0_43] : memref<8x8x32xbf16, #tpu.memory_space<vmem>>, vector<1x8x32xbf16>
    %149 = vector.shape_cast %148 : vector<1x8x32xbf16> to vector<8x32xbf16>
    %150 = vector.shape_cast %146 : vector<8x32xbf16> to vector<1x8x32xbf16>
    tpu.vector_store %arg8[%147, %c0_42, %c0_43], %150 {strides = array<i32>} : memref<8x8x32xbf16, #tpu.memory_space<vmem>>, vector<1x8x32xbf16>,
    %c3_i32 = arith.constant 3 : i32
    %151 = arith.index_cast %c3_i32 : i32 to index
    %c0_44 = arith.constant 0 : index
    %c0_45 = arith.constant 0 : index
    %152 = vector.load %arg9[%151, %c0_44, %c0_45] : memref<8x8x128xf32, #tpu.memory_space<vmem>>, vector<1x8x128xf32>
    %153 = vector.shape_cast %152 : vector<1x8x128xf32> to vector<8x128xf32>
    %154 = arith.truncf %142 : vector<8x32xf32> to vector<8x32xbf16>
    %cst_46 = arith.constant dense<0.000000e+00> : vector<8x128xf32>
    %155 = tpu.matmul %154, %7, %cst_46 {dimension_numbers = #tpu.dot_dimension_numbers<[1], [0], [0], [1], [0, 0, 1, 1], [], []>} : vector<8x32xbf16>, vector<32x128xbf16>, vector<8x128xf32> -> vector<8x128xf32>
    %156 = arith.addf %153, %155 : vector<8x128xf32>
    %157 = vector.extract_strided_slice %156 {offsets = [0, 0], sizes = [8, 32], strides = [1, 1]} : vector<8x128xf32> to vector<8x32xf32>
    %158 = arith.negf %157 : vector<8x32xf32>
    %159 = math.exp %158 : vector<8x32xf32>
    %cst_47 = arith.constant 1.000000e+00 : f32
    %160 = vector.broadcast %cst_47 : f32 to vector<8x32xf32>
    %161 = arith.addf %160, %159 : vector<8x32xf32>
    %162 = arith.divf %160, %161 : vector<8x32xf32>
    %163 = vector.extract_strided_slice %156 {offsets = [0, 32], sizes = [8, 32], strides = [1, 1]} : vector<8x128xf32> to vector<8x32xf32>
    %164 = arith.negf %163 : vector<8x32xf32>
    %165 = math.exp %164 : vector<8x32xf32>
    %cst_48 = arith.constant 1.000000e+00 : f32
    %166 = vector.broadcast %cst_48 : f32 to vector<8x32xf32>
    %167 = arith.addf %166, %165 : vector<8x32xf32>
    %168 = arith.divf %166, %167 : vector<8x32xf32>
    %169 = vector.extract_strided_slice %156 {offsets = [0, 64], sizes = [8, 32], strides = [1, 1]} : vector<8x128xf32> to vector<8x32xf32>
    %170 = math.tanh %169 : vector<8x32xf32>
    %171 = vector.extract_strided_slice %156 {offsets = [0, 96], sizes = [8, 32], strides = [1, 1]} : vector<8x128xf32> to vector<8x32xf32>
    %172 = arith.negf %171 : vector<8x32xf32>
    %173 = math.exp %172 : vector<8x32xf32>
    %cst_49 = arith.constant 1.000000e+00 : f32
    %174 = vector.broadcast %cst_49 : f32 to vector<8x32xf32>
    %175 = arith.addf %174, %173 : vector<8x32xf32>
    %176 = arith.divf %174, %175 : vector<8x32xf32>
    %177 = arith.mulf %168, %145 : vector<8x32xf32>
    %178 = arith.mulf %162, %170 : vector<8x32xf32>
    %179 = arith.addf %177, %178 : vector<8x32xf32>
    %180 = math.tanh %179 : vector<8x32xf32>
    %181 = arith.mulf %176, %180 : vector<8x32xf32>
    %182 = vector.broadcast %c3_i32 : i32 to vector<8x1xi32>
    %183 = arith.cmpi sgt, %3, %182 : vector<8x1xi32>
    %184 = vector.shape_cast %183 : vector<8x1xi1> to vector<8x1xi1>
    %185 = vector.broadcast %184 : vector<8x1xi1> to vector<8x32xi1>
    %186 = arith.select %185, %181, %142 : vector<8x32xi1>, vector<8x32xf32>
    %187 = vector.shape_cast %183 : vector<8x1xi1> to vector<8x1xi1>
    %188 = vector.broadcast %187 : vector<8x1xi1> to vector<8x32xi1>
    %189 = arith.select %188, %179, %145 : vector<8x32xi1>, vector<8x32xf32>
    %190 = arith.truncf %186 : vector<8x32xf32> to vector<8x32xbf16>
    %191 = arith.index_cast %c3_i32 : i32 to index
    %c0_50 = arith.constant 0 : index
    %c0_51 = arith.constant 0 : index
    %192 = vector.load %arg8[%191, %c0_50, %c0_51] : memref<8x8x32xbf16, #tpu.memory_space<vmem>>, vector<1x8x32xbf16>
    %193 = vector.shape_cast %192 : vector<1x8x32xbf16> to vector<8x32xbf16>
    %194 = vector.shape_cast %190 : vector<8x32xbf16> to vector<1x8x32xbf16>
    tpu.vector_store %arg8[%191, %c0_50, %c0_51], %194 {strides = array<i32>} : memref<8x8x32xbf16, #tpu.memory_space<vmem>>, vector<1x8x32xbf16>,
    %c4_i32 = arith.constant 4 : i32
    %195 = arith.index_cast %c4_i32 : i32 to index
    %c0_52 = arith.constant 0 : index
    %c0_53 = arith.constant 0 : index
    %196 = vector.load %arg9[%195, %c0_52, %c0_53] : memref<8x8x128xf32, #tpu.memory_space<vmem>>, vector<1x8x128xf32>
    %197 = vector.shape_cast %196 : vector<1x8x128xf32> to vector<8x128xf32>
    %198 = arith.truncf %186 : vector<8x32xf32> to vector<8x32xbf16>
    %cst_54 = arith.constant dense<0.000000e+00> : vector<8x128xf32>
    %199 = tpu.matmul %198, %7, %cst_54 {dimension_numbers = #tpu.dot_dimension_numbers<[1], [0], [0], [1], [0, 0, 1, 1], [], []>} : vector<8x32xbf16>, vector<32x128xbf16>, vector<8x128xf32> -> vector<8x128xf32>
    %200 = arith.addf %197, %199 : vector<8x128xf32>
    %201 = vector.extract_strided_slice %200 {offsets = [0, 0], sizes = [8, 32], strides = [1, 1]} : vector<8x128xf32> to vector<8x32xf32>
    %202 = arith.negf %201 : vector<8x32xf32>
    %203 = math.exp %202 : vector<8x32xf32>
    %cst_55 = arith.constant 1.000000e+00 : f32
    %204 = vector.broadcast %cst_55 : f32 to vector<8x32xf32>
    %205 = arith.addf %204, %203 : vector<8x32xf32>
    %206 = arith.divf %204, %205 : vector<8x32xf32>
    %207 = vector.extract_strided_slice %200 {offsets = [0, 32], sizes = [8, 32], strides = [1, 1]} : vector<8x128xf32> to vector<8x32xf32>
    %208 = arith.negf %207 : vector<8x32xf32>
    %209 = math.exp %208 : vector<8x32xf32>
    %cst_56 = arith.constant 1.000000e+00 : f32
    %210 = vector.broadcast %cst_56 : f32 to vector<8x32xf32>
    %211 = arith.addf %210, %209 : vector<8x32xf32>
    %212 = arith.divf %210, %211 : vector<8x32xf32>
    %213 = vector.extract_strided_slice %200 {offsets = [0, 64], sizes = [8, 32], strides = [1, 1]} : vector<8x128xf32> to vector<8x32xf32>
    %214 = math.tanh %213 : vector<8x32xf32>
    %215 = vector.extract_strided_slice %200 {offsets = [0, 96], sizes = [8, 32], strides = [1, 1]} : vector<8x128xf32> to vector<8x32xf32>
    %216 = arith.negf %215 : vector<8x32xf32>
    %217 = math.exp %216 : vector<8x32xf32>
    %cst_57 = arith.constant 1.000000e+00 : f32
    %218 = vector.broadcast %cst_57 : f32 to vector<8x32xf32>
    %219 = arith.addf %218, %217 : vector<8x32xf32>
    %220 = arith.divf %218, %219 : vector<8x32xf32>
    %221 = arith.mulf %212, %189 : vector<8x32xf32>
    %222 = arith.mulf %206, %214 : vector<8x32xf32>
    %223 = arith.addf %221, %222 : vector<8x32xf32>
    %224 = math.tanh %223 : vector<8x32xf32>
    %225 = arith.mulf %220, %224 : vector<8x32xf32>
    %226 = vector.broadcast %c4_i32 : i32 to vector<8x1xi32>
    %227 = arith.cmpi sgt, %3, %226 : vector<8x1xi32>
    %228 = vector.shape_cast %227 : vector<8x1xi1> to vector<8x1xi1>
    %229 = vector.broadcast %228 : vector<8x1xi1> to vector<8x32xi1>
    %230 = arith.select %229, %225, %186 : vector<8x32xi1>, vector<8x32xf32>
    %231 = vector.shape_cast %227 : vector<8x1xi1> to vector<8x1xi1>
    %232 = vector.broadcast %231 : vector<8x1xi1> to vector<8x32xi1>
    %233 = arith.select %232, %223, %189 : vector<8x32xi1>, vector<8x32xf32>
    %234 = arith.truncf %230 : vector<8x32xf32> to vector<8x32xbf16>
    %235 = arith.index_cast %c4_i32 : i32 to index
    %c0_58 = arith.constant 0 : index
    %c0_59 = arith.constant 0 : index
    %236 = vector.load %arg8[%235, %c0_58, %c0_59] : memref<8x8x32xbf16, #tpu.memory_space<vmem>>, vector<1x8x32xbf16>
    %237 = vector.shape_cast %236 : vector<1x8x32xbf16> to vector<8x32xbf16>
    %238 = vector.shape_cast %234 : vector<8x32xbf16> to vector<1x8x32xbf16>
    tpu.vector_store %arg8[%235, %c0_58, %c0_59], %238 {strides = array<i32>} : memref<8x8x32xbf16, #tpu.memory_space<vmem>>, vector<1x8x32xbf16>,
    %c5_i32 = arith.constant 5 : i32
    %239 = arith.index_cast %c5_i32 : i32 to index
    %c0_60 = arith.constant 0 : index
    %c0_61 = arith.constant 0 : index
    %240 = vector.load %arg9[%239, %c0_60, %c0_61] : memref<8x8x128xf32, #tpu.memory_space<vmem>>, vector<1x8x128xf32>
    %241 = vector.shape_cast %240 : vector<1x8x128xf32> to vector<8x128xf32>
    %242 = arith.truncf %230 : vector<8x32xf32> to vector<8x32xbf16>
    %cst_62 = arith.constant dense<0.000000e+00> : vector<8x128xf32>
    %243 = tpu.matmul %242, %7, %cst_62 {dimension_numbers = #tpu.dot_dimension_numbers<[1], [0], [0], [1], [0, 0, 1, 1], [], []>} : vector<8x32xbf16>, vector<32x128xbf16>, vector<8x128xf32> -> vector<8x128xf32>
    %244 = arith.addf %241, %243 : vector<8x128xf32>
    %245 = vector.extract_strided_slice %244 {offsets = [0, 0], sizes = [8, 32], strides = [1, 1]} : vector<8x128xf32> to vector<8x32xf32>
    %246 = arith.negf %245 : vector<8x32xf32>
    %247 = math.exp %246 : vector<8x32xf32>
    %cst_63 = arith.constant 1.000000e+00 : f32
    %248 = vector.broadcast %cst_63 : f32 to vector<8x32xf32>
    %249 = arith.addf %248, %247 : vector<8x32xf32>
    %250 = arith.divf %248, %249 : vector<8x32xf32>
    %251 = vector.extract_strided_slice %244 {offsets = [0, 32], sizes = [8, 32], strides = [1, 1]} : vector<8x128xf32> to vector<8x32xf32>
    %252 = arith.negf %251 : vector<8x32xf32>
    %253 = math.exp %252 : vector<8x32xf32>
    %cst_64 = arith.constant 1.000000e+00 : f32
    %254 = vector.broadcast %cst_64 : f32 to vector<8x32xf32>
    %255 = arith.addf %254, %253 : vector<8x32xf32>
    %256 = arith.divf %254, %255 : vector<8x32xf32>
    %257 = vector.extract_strided_slice %244 {offsets = [0, 64], sizes = [8, 32], strides = [1, 1]} : vector<8x128xf32> to vector<8x32xf32>
    %258 = math.tanh %257 : vector<8x32xf32>
    %259 = vector.extract_strided_slice %244 {offsets = [0, 96], sizes = [8, 32], strides = [1, 1]} : vector<8x128xf32> to vector<8x32xf32>
    %260 = arith.negf %259 : vector<8x32xf32>
    %261 = math.exp %260 : vector<8x32xf32>
    %cst_65 = arith.constant 1.000000e+00 : f32
    %262 = vector.broadcast %cst_65 : f32 to vector<8x32xf32>
    %263 = arith.addf %262, %261 : vector<8x32xf32>
    %264 = arith.divf %262, %263 : vector<8x32xf32>
    %265 = arith.mulf %256, %233 : vector<8x32xf32>
    %266 = arith.mulf %250, %258 : vector<8x32xf32>
    %267 = arith.addf %265, %266 : vector<8x32xf32>
    %268 = math.tanh %267 : vector<8x32xf32>
    %269 = arith.mulf %264, %268 : vector<8x32xf32>
    %270 = vector.broadcast %c5_i32 : i32 to vector<8x1xi32>
    %271 = arith.cmpi sgt, %3, %270 : vector<8x1xi32>
    %272 = vector.shape_cast %271 : vector<8x1xi1> to vector<8x1xi1>
    %273 = vector.broadcast %272 : vector<8x1xi1> to vector<8x32xi1>
    %274 = arith.select %273, %269, %230 : vector<8x32xi1>, vector<8x32xf32>
    %275 = vector.shape_cast %271 : vector<8x1xi1> to vector<8x1xi1>
    %276 = vector.broadcast %275 : vector<8x1xi1> to vector<8x32xi1>
    %277 = arith.select %276, %267, %233 : vector<8x32xi1>, vector<8x32xf32>
    %278 = arith.truncf %274 : vector<8x32xf32> to vector<8x32xbf16>
    %279 = arith.index_cast %c5_i32 : i32 to index
    %c0_66 = arith.constant 0 : index
    %c0_67 = arith.constant 0 : index
    %280 = vector.load %arg8[%279, %c0_66, %c0_67] : memref<8x8x32xbf16, #tpu.memory_space<vmem>>, vector<1x8x32xbf16>
    %281 = vector.shape_cast %280 : vector<1x8x32xbf16> to vector<8x32xbf16>
    %282 = vector.shape_cast %278 : vector<8x32xbf16> to vector<1x8x32xbf16>
    tpu.vector_store %arg8[%279, %c0_66, %c0_67], %282 {strides = array<i32>} : memref<8x8x32xbf16, #tpu.memory_space<vmem>>, vector<1x8x32xbf16>,
    %c6_i32 = arith.constant 6 : i32
    %283 = arith.index_cast %c6_i32 : i32 to index
    %c0_68 = arith.constant 0 : index
    %c0_69 = arith.constant 0 : index
    %284 = vector.load %arg9[%283, %c0_68, %c0_69] : memref<8x8x128xf32, #tpu.memory_space<vmem>>, vector<1x8x128xf32>
    %285 = vector.shape_cast %284 : vector<1x8x128xf32> to vector<8x128xf32>
    %286 = arith.truncf %274 : vector<8x32xf32> to vector<8x32xbf16>
    %cst_70 = arith.constant dense<0.000000e+00> : vector<8x128xf32>
    %287 = tpu.matmul %286, %7, %cst_70 {dimension_numbers = #tpu.dot_dimension_numbers<[1], [0], [0], [1], [0, 0, 1, 1], [], []>} : vector<8x32xbf16>, vector<32x128xbf16>, vector<8x128xf32> -> vector<8x128xf32>
    %288 = arith.addf %285, %287 : vector<8x128xf32>
    %289 = vector.extract_strided_slice %288 {offsets = [0, 0], sizes = [8, 32], strides = [1, 1]} : vector<8x128xf32> to vector<8x32xf32>
    %290 = arith.negf %289 : vector<8x32xf32>
    %291 = math.exp %290 : vector<8x32xf32>
    %cst_71 = arith.constant 1.000000e+00 : f32
    %292 = vector.broadcast %cst_71 : f32 to vector<8x32xf32>
    %293 = arith.addf %292, %291 : vector<8x32xf32>
    %294 = arith.divf %292, %293 : vector<8x32xf32>
    %295 = vector.extract_strided_slice %288 {offsets = [0, 32], sizes = [8, 32], strides = [1, 1]} : vector<8x128xf32> to vector<8x32xf32>
    %296 = arith.negf %295 : vector<8x32xf32>
    %297 = math.exp %296 : vector<8x32xf32>
    %cst_72 = arith.constant 1.000000e+00 : f32
    %298 = vector.broadcast %cst_72 : f32 to vector<8x32xf32>
    %299 = arith.addf %298, %297 : vector<8x32xf32>
    %300 = arith.divf %298, %299 : vector<8x32xf32>
    %301 = vector.extract_strided_slice %288 {offsets = [0, 64], sizes = [8, 32], strides = [1, 1]} : vector<8x128xf32> to vector<8x32xf32>
    %302 = math.tanh %301 : vector<8x32xf32>
    %303 = vector.extract_strided_slice %288 {offsets = [0, 96], sizes = [8, 32], strides = [1, 1]} : vector<8x128xf32> to vector<8x32xf32>
    %304 = arith.negf %303 : vector<8x32xf32>
    %305 = math.exp %304 : vector<8x32xf32>
    %cst_73 = arith.constant 1.000000e+00 : f32
    %306 = vector.broadcast %cst_73 : f32 to vector<8x32xf32>
    %307 = arith.addf %306, %305 : vector<8x32xf32>
    %308 = arith.divf %306, %307 : vector<8x32xf32>
    %309 = arith.mulf %300, %277 : vector<8x32xf32>
    %310 = arith.mulf %294, %302 : vector<8x32xf32>
    %311 = arith.addf %309, %310 : vector<8x32xf32>
    %312 = math.tanh %311 : vector<8x32xf32>
    %313 = arith.mulf %308, %312 : vector<8x32xf32>
    %314 = vector.broadcast %c6_i32 : i32 to vector<8x1xi32>
    %315 = arith.cmpi sgt, %3, %314 : vector<8x1xi32>
    %316 = vector.shape_cast %315 : vector<8x1xi1> to vector<8x1xi1>
    %317 = vector.broadcast %316 : vector<8x1xi1> to vector<8x32xi1>
    %318 = arith.select %317, %313, %274 : vector<8x32xi1>, vector<8x32xf32>
    %319 = vector.shape_cast %315 : vector<8x1xi1> to vector<8x1xi1>
    %320 = vector.broadcast %319 : vector<8x1xi1> to vector<8x32xi1>
    %321 = arith.select %320, %311, %277 : vector<8x32xi1>, vector<8x32xf32>
    %322 = arith.truncf %318 : vector<8x32xf32> to vector<8x32xbf16>
    %323 = arith.index_cast %c6_i32 : i32 to index
    %c0_74 = arith.constant 0 : index
    %c0_75 = arith.constant 0 : index
    %324 = vector.load %arg8[%323, %c0_74, %c0_75] : memref<8x8x32xbf16, #tpu.memory_space<vmem>>, vector<1x8x32xbf16>
    %325 = vector.shape_cast %324 : vector<1x8x32xbf16> to vector<8x32xbf16>
    %326 = vector.shape_cast %322 : vector<8x32xbf16> to vector<1x8x32xbf16>
    tpu.vector_store %arg8[%323, %c0_74, %c0_75], %326 {strides = array<i32>} : memref<8x8x32xbf16, #tpu.memory_space<vmem>>, vector<1x8x32xbf16>,
    %c7_i32 = arith.constant 7 : i32
    %327 = arith.index_cast %c7_i32 : i32 to index
    %c0_76 = arith.constant 0 : index
    %c0_77 = arith.constant 0 : index
    %328 = vector.load %arg9[%327, %c0_76, %c0_77] : memref<8x8x128xf32, #tpu.memory_space<vmem>>, vector<1x8x128xf32>
    %329 = vector.shape_cast %328 : vector<1x8x128xf32> to vector<8x128xf32>
    %330 = arith.truncf %318 : vector<8x32xf32> to vector<8x32xbf16>
    %cst_78 = arith.constant dense<0.000000e+00> : vector<8x128xf32>
    %331 = tpu.matmul %330, %7, %cst_78 {dimension_numbers = #tpu.dot_dimension_numbers<[1], [0], [0], [1], [0, 0, 1, 1], [], []>} : vector<8x32xbf16>, vector<32x128xbf16>, vector<8x128xf32> -> vector<8x128xf32>
    %332 = arith.addf %329, %331 : vector<8x128xf32>
    %333 = vector.extract_strided_slice %332 {offsets = [0, 0], sizes = [8, 32], strides = [1, 1]} : vector<8x128xf32> to vector<8x32xf32>
    %334 = arith.negf %333 : vector<8x32xf32>
    %335 = math.exp %334 : vector<8x32xf32>
    %cst_79 = arith.constant 1.000000e+00 : f32
    %336 = vector.broadcast %cst_79 : f32 to vector<8x32xf32>
    %337 = arith.addf %336, %335 : vector<8x32xf32>
    %338 = arith.divf %336, %337 : vector<8x32xf32>
    %339 = vector.extract_strided_slice %332 {offsets = [0, 32], sizes = [8, 32], strides = [1, 1]} : vector<8x128xf32> to vector<8x32xf32>
    %340 = arith.negf %339 : vector<8x32xf32>
    %341 = math.exp %340 : vector<8x32xf32>
    %cst_80 = arith.constant 1.000000e+00 : f32
    %342 = vector.broadcast %cst_80 : f32 to vector<8x32xf32>
    %343 = arith.addf %342, %341 : vector<8x32xf32>
    %344 = arith.divf %342, %343 : vector<8x32xf32>
    %345 = vector.extract_strided_slice %332 {offsets = [0, 64], sizes = [8, 32], strides = [1, 1]} : vector<8x128xf32> to vector<8x32xf32>
    %346 = math.tanh %345 : vector<8x32xf32>
    %347 = vector.extract_strided_slice %332 {offsets = [0, 96], sizes = [8, 32], strides = [1, 1]} : vector<8x128xf32> to vector<8x32xf32>
    %348 = arith.negf %347 : vector<8x32xf32>
    %349 = math.exp %348 : vector<8x32xf32>
    %cst_81 = arith.constant 1.000000e+00 : f32
    %350 = vector.broadcast %cst_81 : f32 to vector<8x32xf32>
    %351 = arith.addf %350, %349 : vector<8x32xf32>
    %352 = arith.divf %350, %351 : vector<8x32xf32>
    %353 = arith.mulf %344, %321 : vector<8x32xf32>
    %354 = arith.mulf %338, %346 : vector<8x32xf32>
    %355 = arith.addf %353, %354 : vector<8x32xf32>
    %356 = math.tanh %355 : vector<8x32xf32>
    %357 = arith.mulf %352, %356 : vector<8x32xf32>
    %358 = vector.broadcast %c7_i32 : i32 to vector<8x1xi32>
    %359 = arith.cmpi sgt, %3, %358 : vector<8x1xi32>
    %360 = vector.shape_cast %359 : vector<8x1xi1> to vector<8x1xi1>
    %361 = vector.broadcast %360 : vector<8x1xi1> to vector<8x32xi1>
    %362 = arith.select %361, %357, %318 : vector<8x32xi1>, vector<8x32xf32>
    %363 = vector.shape_cast %359 : vector<8x1xi1> to vector<8x1xi1>
    %364 = vector.broadcast %363 : vector<8x1xi1> to vector<8x32xi1>
    %365 = arith.select %364, %355, %321 : vector<8x32xi1>, vector<8x32xf32>
    %366 = arith.truncf %362 : vector<8x32xf32> to vector<8x32xbf16>
    %367 = arith.index_cast %c7_i32 : i32 to index
    %c0_82 = arith.constant 0 : index
    %c0_83 = arith.constant 0 : index
    %368 = vector.load %arg8[%367, %c0_82, %c0_83] : memref<8x8x32xbf16, #tpu.memory_space<vmem>>, vector<1x8x32xbf16>
    %369 = vector.shape_cast %368 : vector<1x8x32xbf16> to vector<8x32xbf16>
    %370 = vector.shape_cast %366 : vector<8x32xbf16> to vector<1x8x32xbf16>
    tpu.vector_store %arg8[%367, %c0_82, %c0_83], %370 {strides = array<i32>} : memref<8x8x32xbf16, #tpu.memory_space<vmem>>, vector<1x8x32xbf16>,
    %c8_i32 = arith.constant 8 : i32
    %c0_84 = arith.constant 0 : index
    %c0_85 = arith.constant 0 : index
    %c0_86 = arith.constant 0 : index
    %371 = vector.load %arg6[%c0_84, %c0_85, %c0_86] : memref<1x8x32xf32, #tpu.memory_space<vmem>>, vector<1x8x32xf32>
    %372 = vector.shape_cast %371 : vector<1x8x32xf32> to vector<8x32xf32>
    %373 = vector.shape_cast %362 : vector<8x32xf32> to vector<1x8x32xf32>
    tpu.vector_store %arg6[%c0_84, %c0_85, %c0_86], %373 {strides = array<i32>} : memref<1x8x32xf32, #tpu.memory_space<vmem>>, vector<1x8x32xf32>,
    %c0_87 = arith.constant 0 : index
    %c0_88 = arith.constant 0 : index
    %c0_89 = arith.constant 0 : index
    %374 = vector.load %arg7[%c0_87, %c0_88, %c0_89] : memref<1x8x32xf32, #tpu.memory_space<vmem>>, vector<1x8x32xf32>
    %375 = vector.shape_cast %374 : vector<1x8x32xf32> to vector<8x32xf32>
    %376 = vector.shape_cast %365 : vector<8x32xf32> to vector<1x8x32xf32>
    tpu.vector_store %arg7[%c0_87, %c0_88, %c0_89], %376 {strides = array<i32>} : memref<1x8x32xf32, #tpu.memory_space<vmem>>, vector<1x8x32xf32>,
    return
  }
  func.func @transform_0(%arg0: i32) -> (i32, i32) {
    %c0_i32 = arith.constant 0 : i32
    %c0_i32_0 = arith.constant 0 : i32
    %c0_i32_1 = arith.constant 0 : i32
    return %c0_i32, %c0_i32_0 : i32, i32
  }
  func.func @transform_2(%arg0: i32) -> (i32, i32, i32) {
    %c0_i32 = arith.constant 0 : i32
    %c0_i32_0 = arith.constant 0 : i32
    %c0_i32_1 = arith.constant 0 : i32
    return %arg0, %c0_i32, %c0_i32_0 : i32, i32, i32
  }
  func.func @transform_3(%arg0: i32) -> (i32, i32, i32) {
    %c0_i32 = arith.constant 0 : i32
    %c0_i32_0 = arith.constant 0 : i32
    %c0_i32_1 = arith.constant 0 : i32
    return %arg0, %c0_i32, %c0_i32_0 : i32, i32, i32
  }
  func.func @transform_4(%arg0: i32) -> (i32, i32, i32) {
    %c0_i32 = arith.constant 0 : i32
    %c0_i32_0 = arith.constant 0 : i32
    %c0_i32_1 = arith.constant 0 : i32
    return %arg0, %c0_i32, %c0_i32_0 : i32, i32, i32
  }
  func.func @transform_5(%arg0: i32) -> (i32, i32, i32) {
    %c0_i32 = arith.constant 0 : i32
    %c0_i32_0 = arith.constant 0 : i32
    %c0_i32_1 = arith.constant 0 : i32
    return %arg0, %c0_i32, %c0_i32_0 : i32, i32, i32
  }
  func.func @transform_6(%arg0: i32) -> (i32, i32, i32) {
    %c0_i32 = arith.constant 0 : i32
    %c0_i32_0 = arith.constant 0 : i32
    %c0_i32_1 = arith.constant 0 : i32
    return %arg0, %c0_i32, %c0_i32_0 : i32, i32, i32
  }
}

</mosaic_0001>

<llo_original>
// kernel: tpu_custom_call.1
$region0: #{tpu_custom_call.1}
  #allocation0 [shape = 'u32[]', space=smem, size = 0x4, offset = 0x4, fixed_abs, tag = 'smem constant byte address 0x4 - core index']
  #allocation1 [shape = 'u32[144,128]{1,0:T(1,128)}', space=vmem, size = 0x12000, scoped, tag = 'internal scratch']
  #allocation2 [shape = 'bf16[8,8,32]{2,1,0:T(8,128)(2,1)}', space=vmem, size = 0x4000, scoped, tag = 'scratch operand']
  #allocation3 [shape = 'f32[8,8,128]{2,1,0:T(8,128)}', space=vmem, size = 0x8000, scoped, tag = 'scratch operand']
  #allocation4 [shape = 's32[1]{0}', space=sflag, size = 0x4, scoped, tag = 'scratch operand']
  #allocation13 [shape = 's32[]', space=sflag, size = 0x4, offset = 0, fixed_abs, tag = 'sflag constant byte address 0x0 - dummy sync flag']
  #allocation14 [shape = 's32[]', space=sflag, size = 0x4, offset = 0, fixed_abs, tag = 'sflag constant byte address 0x0 - dummy sync flag']
  #allocation15 [shape = 'u32[]', space=smem, size = 0x4, offset = 0x44, fixed_abs, tag = 'smem constant byte address 0x44 - assertion arg 0']
  #allocation16 [shape = 'u32[]', space=smem, size = 0x4, offset = 0x48, fixed_abs, tag = 'smem constant byte address 0x48 - assertion arg 1']
  %s0 = inlined_call_operand.vmem [shape: s32[8,1], index: 0, kind: input, shape index: {}]
  %s1 = inlined_call_operand.hbm [shape: bf16[8,8,32], index: 1, kind: input, shape index: {}]
  %s2 = inlined_call_operand.hbm [shape: bf16[2,32,128], index: 2, kind: input, shape index: {}]
  %s3 = inlined_call_operand.hbm [shape: bf16[2,32,128], index: 3, kind: input, shape index: {}]
  %s4 = inlined_call_operand.vmem [shape: f32[2,1,128], index: 4, kind: input, shape index: {}]
  %s5 = inlined_call_operand.hbm [shape: f32[2,8,32], index: 5, kind: output, shape index: {0}]
  %s6 = inlined_call_operand.hbm [shape: f32[2,8,32], index: 6, kind: output, shape index: {1}]
  %7 = xla_tuple %s5, %s6
  %s8 = sld [smem:[#allocation0]]
  $region73: #{tpu_custom_call.1} parent=0
    _
  %s10 = ssub.s32 1, %s8
  %s11 = scalar_select 0, %s10, %s8
  $region1: #{tpu_custom_call.1} parent=0
    #allocation5 [shape = 'u8[16384]{0}', space=vmem, size = 0x4000, scoped, tag = 'input window, operand 2']
    #allocation6 [shape = 's32[2]{0}', space=sflag, size = 0x8, scoped, tag = 'scoped memory for tpu_custom_call.1']
    #allocation7 [shape = 's32[2]{0}', space=sflag, size = 0x8, scoped, tag = 'scoped memory for tpu_custom_call.1']
    #allocation8 [shape = 'u8[16384]{0}', space=vmem, size = 0x4000, scoped, tag = 'input window, operand 3']
    #allocation9 [shape = 's32[2]{0}', space=sflag, size = 0x8, scoped, tag = 'scoped memory for tpu_custom_call.1']
    #allocation10 [shape = 'u8[8192]{0}', space=vmem, size = 0x2000, scoped, tag = 'output window, operand 0']
    #allocation11 [shape = 'u8[8192]{0}', space=vmem, size = 0x2000, scoped, tag = 'output window, operand 1']
    #allocation12 [shape = 's32[2]{0}', space=sflag, size = 0x8, scoped, tag = 'scoped memory for tpu_custom_call.1']
    %12 = vsyncpa [#allocation6], 0
    %s13 = scalar_lea.sflag [#allocation6], 1
    %14 = vsyncpa %s13, 0
    %15 = vsyncpa [#allocation9], 0
    %s16 = scalar_lea.sflag [#allocation9], 1
    %17 = vsyncpa %s16, 0
    %18 = vsyncpa [#allocation7], 0
    %s19 = scalar_lea.sflag [#allocation7], 1
    %20 = vsyncpa %s19, 0
    %21 = vsyncpa [#allocation12], 0
    %s22 = scalar_lea.sflag [#allocation12], 1
    %23 = vsyncpa %s22, 0
    loop: start=0, step=1, limit=4
    $region2: #{tpu_custom_call.1} parent=1 // loop_pre_header
      _
    $region3: #{tpu_custom_call.1} parent=1 // loop_header
      %s25 = sphi 0, %s29
      %p26 = scmp.ge.s32.totalorder %s25, 4
      %s33 = sphi 0, %s33
      %s35 = sphi 0, %s33
      %s36 = sphi 0, %s35
      %s50 = sphi 0, %s36
      %s56 = sphi 0, %s58
      %s59 = sphi 0, %s56
      %s60 = sphi 0, %s59
      %s76 = sphi 0, %s60
      %s82 = sphi 0, %s84
      %s85 = sphi 0, %s82
      %s86 = sphi 0, %s85
      %s102 = sphi 0, %s86
      %s108 = sphi 0, %s110
      %s111 = sphi 0, %s108
      %s112 = sphi 0, %s111
      %s128 = sphi 0, %s112
      %s134 = sphi 0, %s136
      %s137 = sphi 0, %s134
      %s138 = sphi 0, %s137
      %s154 = sphi 0, %s138
      %s160 = sphi 0, %s162
      %s163 = sphi 0, %s160
      %s164 = sphi 0, %s163
      %s180 = sphi 0, %s164
    $region4: #{tpu_custom_call.1} parent=1 // loop_header_branch
      %28 = sbr.rel (%p26) target = $region8
    $region5: #{tpu_custom_call.1} parent=1 // loop_body
      %s30 = ssub.s32 %s25, 1
      %s31 = ssub.s32 %s25, 2
      %s32 = sadd.s32 %s25, 1
      %s34 = sadd.s32 %s33, 1
      %p37 = scmp.eq.s32.totalorder %s25, 1
      %p38 = scmp.ne.s32.totalorder %s33, %s35
      %p39 = scmp.eq.s32.totalorder %s25, 0
      %p40 = por %p38, %p39
      %p41 = scmp.ne.s32.totalorder %s33, %s35
      %p42 = scmp.eq.s32.totalorder %s30, 1
      %p43 = por %p41, %p42
      %p44 = scmp.ne.s32.totalorder %s35, %s36
      %p45 = scmp.eq.s32.totalorder %s30, 0
      %p46 = por %p44, %p45
      %p47 = scmp.ne.s32.totalorder %s35, %s36
      %p48 = scmp.eq.s32.totalorder %s31, 1
      %p49 = por %p47, %p48
      %p51 = scmp.ne.s32.totalorder %s36, %s50
      %p52 = scmp.eq.s32.totalorder %s31, 0
      %p53 = por %p51, %p52
      %s54 = ssub.s32 %s25, %s32
      %p55 = scmp.eq.s32.totalorder %s54, 0
      %s57 = sadd.s32 %s56, 1
      %s58 = scalar_select %p55, %s56, %s57
      %p61 = pneg %p55
      %p62 = scmp.eq.s32.totalorder %s25, 1
      %p63 = por %p61, %p62
      %p64 = scmp.ne.s32.totalorder %s56, %s59
      %p65 = scmp.eq.s32.totalorder %s25, 0
      %p66 = por %p64, %p65
      %p67 = scmp.ne.s32.totalorder %s56, %s59
      %p68 = scmp.eq.s32.totalorder %s30, 1
      %p69 = por %p67, %p68
      %p70 = scmp.ne.s32.totalorder %s59, %s60
      %p71 = scmp.eq.s32.totalorder %s30, 0
      %p72 = por %p70, %p71
      %p73 = scmp.ne.s32.totalorder %s59, %s60
      %p74 = scmp.eq.s32.totalorder %s31, 1
      %p75 = por %p73, %p74
      %p77 = scmp.ne.s32.totalorder %s60, %s76
      %p78 = scmp.eq.s32.totalorder %s31, 0
      %p79 = por %p77, %p78
      %s80 = ssub.s32 %s25, %s32
      %p81 = scmp.eq.s32.totalorder %s80, 0
      %s83 = sadd.s32 %s82, 1
      %s84 = scalar_select %p81, %s82, %s83
      %p87 = pneg %p81
      %p88 = scmp.eq.s32.totalorder %s25, 1
      %p89 = por %p87, %p88
      %p90 = scmp.ne.s32.totalorder %s82, %s85
      %p91 = scmp.eq.s32.totalorder %s25, 0
      %p92 = por %p90, %p91
      %p93 = scmp.ne.s32.totalorder %s82, %s85
      %p94 = scmp.eq.s32.totalorder %s30, 1
      %p95 = por %p93, %p94
      %p96 = scmp.ne.s32.totalorder %s85, %s86
      %p97 = scmp.eq.s32.totalorder %s30, 0
      %p98 = por %p96, %p97
      %p99 = scmp.ne.s32.totalorder %s85, %s86
      %p100 = scmp.eq.s32.totalorder %s31, 1
      %p101 = por %p99, %p100
      %p103 = scmp.ne.s32.totalorder %s86, %s102
      %p104 = scmp.eq.s32.totalorder %s31, 0
      %p105 = por %p103, %p104
      %s106 = ssub.s32 %s25, %s32
      %p107 = scmp.eq.s32.totalorder %s106, 0
      %s109 = sadd.s32 %s108, 1
      %s110 = scalar_select %p107, %s108, %s109
      %p113 = pneg %p107
      %p114 = scmp.eq.s32.totalorder %s25, 1
      %p115 = por %p113, %p114
      %p116 = scmp.ne.s32.totalorder %s108, %s111
      %p117 = scmp.eq.s32.totalorder %s25, 0
      %p118 = por %p116, %p117
      %p119 = scmp.ne.s32.totalorder %s108, %s111
      %p120 = scmp.eq.s32.totalorder %s30, 1
      %p121 = por %p119, %p120
      %p122 = scmp.ne.s32.totalorder %s111, %s112
      %p123 = scmp.eq.s32.totalorder %s30, 0
      %p124 = por %p122, %p123
      %p125 = scmp.ne.s32.totalorder %s111, %s112
      %p126 = scmp.eq.s32.totalorder %s31, 1
      %p127 = por %p125, %p126
      %p129 = scmp.ne.s32.totalorder %s112, %s128
      %p130 = scmp.eq.s32.totalorder %s31, 0
      %p131 = por %p129, %p130
      %s132 = ssub.s32 %s25, %s32
      %p133 = scmp.eq.s32.totalorder %s132, 0
      %s135 = sadd.s32 %s134, 1
      %s136 = scalar_select %p133, %s134, %s135
      %p139 = pneg %p133
      %p140 = scmp.eq.s32.totalorder %s25, 1
      %p141 = por %p139, %p140
      %p142 = scmp.ne.s32.totalorder %s134, %s137
      %p143 = scmp.eq.s32.totalorder %s25, 0
      %p144 = por %p142, %p143
      %p145 = scmp.ne.s32.totalorder %s134, %s137
      %p146 = scmp.eq.s32.totalorder %s30, 1
      %p147 = por %p145, %p146
      %p148 = scmp.ne.s32.totalorder %s137, %s138
      %p149 = scmp.eq.s32.totalorder %s30, 0
      %p150 = por %p148, %p149
      %p151 = scmp.ne.s32.totalorder %s137, %s138
      %p152 = scmp.eq.s32.totalorder %s31, 1
      %p153 = por %p151, %p152
      %p155 = scmp.ne.s32.totalorder %s138, %s154
      %p156 = scmp.eq.s32.totalorder %s31, 0
      %p157 = por %p155, %p156
      %s158 = ssub.s32 %s25, %s32
      %p159 = scmp.eq.s32.totalorder %s158, 0
      %s161 = sadd.s32 %s160, 1
      %s162 = scalar_select %p159, %s160, %s161
      %p165 = pneg %p159
      %p166 = scmp.eq.s32.totalorder %s25, 1
      %p167 = por %p165, %p166
      %p168 = scmp.ne.s32.totalorder %s160, %s163
      %p169 = scmp.eq.s32.totalorder %s25, 0
      %p170 = por %p168, %p169
      %p171 = scmp.ne.s32.totalorder %s160, %s163
      %p172 = scmp.eq.s32.totalorder %s30, 1
      %p173 = por %p171, %p172
      %p174 = scmp.ne.s32.totalorder %s163, %s164
      %p175 = scmp.eq.s32.totalorder %s30, 0
      %p176 = por %p174, %p175
      %p177 = scmp.ne.s32.totalorder %s163, %s164
      %p178 = scmp.eq.s32.totalorder %s31, 1
      %p179 = por %p177, %p178
      %p181 = scmp.ne.s32.totalorder %s164, %s180
      %p182 = scmp.eq.s32.totalorder %s31, 0
      %p183 = por %p181, %p182
      %p184 = scmp.le.s32.totalorder 1, %s25
      %p185 = scmp.lt.s32.totalorder %s25, 3
      %p186 = pnand %p184, %p185
      %p187 = pneg %p186
      // Predicated region
      $region9: #{tpu_custom_call.1} parent=5 // pred_check
        _
      $region10: #{tpu_custom_call.1} parent=5 // pred_check_branch
        %189 = sbr.rel (%p186) target = $region12
      $region11: #{tpu_custom_call.1} parent=5 // pred_region
        %s190 = ssub.s32 %s25, 1
        // Predicated region
        $region13: #{tpu_custom_call.1} parent=11 // pred_check
          %p191 = pneg %p46
        $region14: #{tpu_custom_call.1} parent=11 // pred_check_branch
          %193 = sbr.rel (%p191) target = $region16
        $region15: #{tpu_custom_call.1} parent=11 // pred_region
          _
        $region16: #{tpu_custom_call.1} parent=11 // pred_fallthru
          _
      $region12: #{tpu_custom_call.1} parent=5 // pred_fallthru
        _
      %p194 = scmp.lt.s32.totalorder %s25, 2
      // Predicated region
      $region17: #{tpu_custom_call.1} parent=5 // pred_check
        %p195 = pneg %p194
      $region18: #{tpu_custom_call.1} parent=5 // pred_check_branch
        %197 = sbr.rel (%p195) target = $region20
      $region19: #{tpu_custom_call.1} parent=5 // pred_region
        // Predicated region
        $region21: #{tpu_custom_call.1} parent=19 // pred_check
          %p198 = pneg %p66
        $region22: #{tpu_custom_call.1} parent=19 // pred_check_branch
          %200 = sbr.rel (%p198) target = $region24
        $region23: #{tpu_custom_call.1} parent=19 // pred_region
          %s201 = sand.u32 %s56, 1
          %s202 = scalar_lea.sflag [#allocation6], %s201
          %s203 = sand.u32 %s56, 1
          %s204 = smul.addr %s203, 16
          %s205 = scalar_lea.vmem [#allocation5], %s204
          %s207 = ssub.s32 256, 256
          %208 = vsyncadd %s202, %s207
          %s209 = smul.addr %s25, 4
          %s210 = smul.addr %s209, 64
          %s211 = scalar_lea.hbm %s2, %s210
          %s212 = sshll.u32 %s205, 4
          %s213 = int_to_ptr.vmem [resolvable:$true] %s212
          %218 = dma.hbm_to_vmem [thread:$0]  %s211, 256, %s213, %s202, 64, 64, 4
        $region24: #{tpu_custom_call.1} parent=19 // pred_fallthru
          _
        // Predicated region
        $region25: #{tpu_custom_call.1} parent=19 // pred_check
          %p219 = pneg %p92
        $region26: #{tpu_custom_call.1} parent=19 // pred_check_branch
          %221 = sbr.rel (%p219) target = $region28
        $region27: #{tpu_custom_call.1} parent=19 // pred_region
          %s222 = sand.u32 %s82, 1
          %s223 = scalar_lea.sflag [#allocation9], %s222
          %s224 = sand.u32 %s82, 1
          %s225 = smul.addr %s224, 16
          %s226 = scalar_lea.vmem [#allocation8], %s225
          %s228 = ssub.s32 256, 256
          %229 = vsyncadd %s223, %s228
          %s230 = smul.addr %s25, 4
          %s231 = smul.addr %s230, 64
          %s232 = scalar_lea.hbm %s3, %s231
          %s233 = sshll.u32 %s226, 4
          %s234 = int_to_ptr.vmem [resolvable:$true] %s233
          %239 = dma.hbm_to_vmem [thread:$0]  %s232, 256, %s234, %s223, 64, 64, 4
        $region28: #{tpu_custom_call.1} parent=19 // pred_fallthru
          _
        // Predicated region
        $region29: #{tpu_custom_call.1} parent=19 // pred_check
          %p240 = pneg %p118
        $region30: #{tpu_custom_call.1} parent=19 // pred_check_branch
          %242 = sbr.rel (%p240) target = $region32
        $region31: #{tpu_custom_call.1} parent=19 // pred_region
          %p243 = scmp.lt.s32.totalorder %s25, 1
          %s244 = scalar_select %p243, %s25, 1
          %s245 = scalar_lea.vmem %s4, %s244
        $region32: #{tpu_custom_call.1} parent=19 // pred_fallthru
          _
      $region20: #{tpu_custom_call.1} parent=5 // pred_fallthru
        _
      %p246 = scmp.le.s32.totalorder 1, %s25
      %p247 = scmp.lt.s32.totalorder %s25, 3
      %p248 = pnand %p246, %p247
      %p249 = pneg %p248
      // Predicated region
      $region33: #{tpu_custom_call.1} parent=5 // pred_check
        _
      $region34: #{tpu_custom_call.1} parent=5 // pred_check_branch
        %251 = sbr.rel (%p248) target = $region36
      $region35: #{tpu_custom_call.1} parent=5 // pred_region
        %s252 = ssub.s32 %s25, 1
        %s253 = sand.u32 %s59, 1
        %s254 = scalar_lea.sflag [#allocation6], %s253
        %s255 = sand.u32 %s59, 1
        %s256 = smul.addr %s255, 16
        %s257 = scalar_lea.vmem [#allocation5], %s256
        // Predicated region
        $region37: #{tpu_custom_call.1} parent=35 // pred_check
          %p258 = pneg %p72
        $region38: #{tpu_custom_call.1} parent=35 // pred_check_branch
          %260 = sbr.rel (%p258) target = $region40
        $region39: #{tpu_custom_call.1} parent=35 // pred_region
          %261 = dma.done %s254, 256
        $region40: #{tpu_custom_call.1} parent=35 // pred_fallthru
          _
        %s262 = sand.u32 %s85, 1
        %s263 = scalar_lea.sflag [#allocation9], %s262
        %s264 = sand.u32 %s85, 1
        %s265 = smul.addr %s264, 16
        %s266 = scalar_lea.vmem [#allocation8], %s265
        // Predicated region
        $region41: #{tpu_custom_call.1} parent=35 // pred_check
          %p267 = pneg %p98
        $region42: #{tpu_custom_call.1} parent=35 // pred_check_branch
          %269 = sbr.rel (%p267) target = $region44
        $region43: #{tpu_custom_call.1} parent=35 // pred_region
          %270 = dma.done %s263, 256
        $region44: #{tpu_custom_call.1} parent=35 // pred_fallthru
          _
        %p271 = pneg %p46
        %p272 = pneg %p43
        %s273 = sand.u32 %s59, 1
        %s274 = scalar_lea.sflag [#allocation6], %s273
        %s275 = sand.u32 %s59, 1
        %s276 = smul.addr %s275, 16
        %s277 = scalar_lea.vmem [#allocation5], %s276
        %p278 = pneg %p72
        %p279 = pneg %p69
        %s280 = sand.u32 %s85, 1
        %s281 = scalar_lea.sflag [#allocation9], %s280
        %s282 = sand.u32 %s85, 1
        %s283 = smul.addr %s282, 16
        %s284 = scalar_lea.vmem [#allocation8], %s283
        %p285 = pneg %p98
        %p286 = pneg %p95
        %p287 = scmp.lt.s32.totalorder %s30, 1
        %s288 = scalar_select %p287, %s30, 1
        %s289 = scalar_lea.vmem %s4, %s288
        %p290 = pneg %p124
        %p291 = pneg %p121
        %p292 = pneg %p150
        %p293 = pneg %p147
        %s294 = sand.u32 %s137, 1
        %s295 = scalar_lea.sflag [#allocation7], %s294
        %s296 = sand.u32 %s137, 1
        %s297 = smul.addr %s296, 8
        %s298 = scalar_lea.vmem [#allocation10], %s297
        %p299 = pneg %p176
        %p300 = pneg %p173
        %s301 = sand.u32 %s163, 1
        %s302 = scalar_lea.sflag [#allocation12], %s301
        %s303 = sand.u32 %s163, 1
        %s304 = smul.addr %s303, 8
        %s305 = scalar_lea.vmem [#allocation11], %s304
        %p306 = scmp.lt.s32.totalorder %s30, 1
        %s307 = scalar_select %p306, %s30, 1
        %s308 = scalar_lea.vmem %s4, %s307
        %p310 = scmp.eq.s32.totalorder %s30, 0
        // Predicated region
        $region45: #{tpu_custom_call.1} parent=35 // pred_check
          %p311 = pneg %p310
        $region46: #{tpu_custom_call.1} parent=35 // pred_check_branch
          %313 = sbr.rel (%p311) target = $region48
        $region47: #{tpu_custom_call.1} parent=35 // pred_region
          // Predicated region
          $region49: #{tpu_custom_call.1} parent=47 // pred_check
            _
          $region50: #{tpu_custom_call.1} parent=47 // pred_check_branch
            %315 = sbr.rel target = $region52
          $region51: #{tpu_custom_call.1} parent=47 // pred_region
            %316 = sst [smem:[#allocation15]] [#allocation14]
            %317 = sst [smem:[#allocation16]] [#allocation13]
          $region52: #{tpu_custom_call.1} parent=47 // pred_fallthru
            _
          %319 = shalt.err (0)
          %s321 = sshll.u32 [#allocation2], 4
          %s322 = int_to_ptr.vmem [resolvable:$true] %s321
          %324 = dma.hbm_to_vmem [thread:$0]  %s1, 512, %s322, [#allocation4]
          %s325 = smul.u32 4, 8
          %s326 = smul.u32 %s325, 1
          %s327 = smul.u32 %s326, 1
          %s328 = sshll.u32 %s327, 4
          %329 = dma.done [#allocation4], %s328
        $region48: #{tpu_custom_call.1} parent=35 // pred_fallthru
          _
        %v330 = vld [vmem:[%s0] sm:$0xff]
        %v331 = vld [vmem:[%s257] sm:$0xf]
        %v332 = vld [vmem:[%s257 + $0x4] sm:$0xf]
        %v333 = vld [vmem:[%s257 + $0x8] sm:$0xf]
        %v334 = vld [vmem:[%s257 + $0xc] sm:$0xf]
        %v335 = vld [vmem:[%s266] sm:$0xf]
        %v336 = vld [vmem:[%s266 + $0x4] sm:$0xf]
        %v337 = vld [vmem:[%s266 + $0x8] sm:$0xf]
        %v338 = vld [vmem:[%s266 + $0xc] sm:$0xf]
        %v339 = vld [vmem:[%s308] sm:$0x1]
        %v340 = vld [vmem:[#allocation2] sm:$0xf]
        %v341 = vld [vmem:[#allocation2 + $0x4] sm:$0xf]
        %v342 = vld [vmem:[#allocation2 + $0x8] sm:$0xf]
        %v343 = vld [vmem:[#allocation2 + $0xc] sm:$0xf]
        %v344 = vld [vmem:[#allocation2 + $0x10] sm:$0xf]
        %v345 = vld [vmem:[#allocation2 + $0x14] sm:$0xf]
        %v346 = vld [vmem:[#allocation2 + $0x18] sm:$0xf]
        %v347 = vld [vmem:[#allocation2 + $0x1c] sm:$0xf]
        %v349 = vlaneseq
        %v350 = vshrl.u32 %v349, 7
        %v351 = vsub.s32 0, %v350
        %v352 = vrot.slane %v339, %v351
        %v362 = vunpack.c.l.b16 %v340
        %v363 = vunpack.c.l.b16 %v341
        %v364 = vunpack.c.l.b16 %v342
        %v365 = vunpack.c.l.b16 %v343
        %v366 = vunpack.c.l.b16 %v344
        %v367 = vunpack.c.l.b16 %v345
        %v368 = vunpack.c.l.b16 %v346
        %v369 = vunpack.c.l.b16 %v347
        %v370 = vpack.c.b16 %v363, %v362
        %v371 = vpack.c.b16 %v365, %v364
        %v372 = vpack.c.b16 %v367, %v366
        %v373 = vpack.c.b16 %v369, %v368
        %v378 = vunpack.c.l.b16 %v331
        %v379 = vunpack.c.l.b16 %v332
        %v380 = vunpack.c.l.b16 %v333
        %v381 = vunpack.c.l.b16 %v334
        %v382 = vpack.c.b16 %v379, %v378
        %v383 = vpack.c.b16 %v381, %v380
        %vm386 = vcmask 261120
        %v388 = vsel %vm386, %v370, 0
        %v391 = vsel %vm386, %v371, 0
        %v394 = vsel %vm386, %v372, 0
        %v397 = vsel %vm386, %v373, 0
        %399 = vmatprep.subr.bf16.mxu0 0
        %400 = vmatpush1.bf16.msra.mxu0 %v382
        %401 = vmatprep.subr.bf16.mxu0 0
        %402 = vmatpush1.bf16.msra.mxu0 %v383
        %403 = vmatprep.subr.bf16.mxu0 0
        %404 = vmatpush1.bf16.msra.mxu0 0
        %405 = vmatprep.subr.bf16.mxu0 0
        %406 = vmatpush1.bf16.msra.mxu0 0
        %407 = vmatprep.subr.bf16.mxu0 0
        %408 = vmatpush1.bf16.msra.mxu0 0
        %409 = vmatprep.subr.bf16.mxu0 0
        %410 = vmatpush1.bf16.msra.mxu0 0
        %411 = vmatprep.subr.bf16.mxu0 0
        %412 = vmatpush1.bf16.msra.mxu0 0
        %413 = vmatprep.subr.bf16.mxu0 0
        %414 = vmatpush1.bf16.msra.mxu0 0
        %415 = vmatprep.subr.bf16.mxu0 0
        %416 = vmatpush1.bf16.msra.mxu0 0
        %417 = vmatprep.subr.bf16.mxu0 0
        %418 = vmatpush1.bf16.msra.mxu0 0
        %419 = vmatprep.subr.bf16.mxu0 0
        %420 = vmatpush1.bf16.msra.mxu0 0
        %421 = vmatprep.subr.bf16.mxu0 0
        %422 = vmatpush1.bf16.msra.mxu0 0
        %423 = vmatprep.subr.bf16.mxu0 0
        %424 = vmatpush1.bf16.msra.mxu0 0
        %425 = vmatprep.subr.bf16.mxu0 0
        %426 = vmatpush1.bf16.msra.mxu0 0
        %427 = vmatprep.subr.bf16.mxu0 0
        %428 = vmatpush1.bf16.msra.mxu0 0
        %429 = vmatprep.subr.bf16.mxu0 0
        %430 = vmatpush1.bf16.msra.mxu0 0
        %431 = vmatprep.mubr.bf16.mxu0 0
        %432 = vmatmul.mubr.bf16.gmra.mrb[0].mxu0 %v388
        %v433 = vpop.f32.mrb[0].mxu0
        %v434 = vadd.f32 %v352, %v433
        %v435 = vpop.f32.mrb[0].mxu0
        %v436 = vpop.f32.mrb[0].mxu0
        %v437 = vadd.f32 %v352, %v436
        %v438 = vpop.f32.mrb[0].mxu0
        %439 = vmatprep.mubr.bf16.mxu0 0
        %440 = vmatmul.mubr.bf16.gmra.mrb[0].mxu0 %v391
        %v441 = vpop.f32.mrb[0].mxu0
        %v442 = vadd.f32 %v352, %v441
        %v443 = vpop.f32.mrb[0].mxu0
        %v444 = vpop.f32.mrb[0].mxu0
        %v445 = vadd.f32 %v352, %v444
        %v446 = vpop.f32.mrb[0].mxu0
        %447 = vmatprep.mubr.bf16.mxu0 0
        %448 = vmatmul.mubr.bf16.gmra.mrb[0].mxu0 %v394
        %v449 = vpop.f32.mrb[0].mxu0
        %v450 = vadd.f32 %v352, %v449
        %v451 = vpop.f32.mrb[0].mxu0
        %v452 = vpop.f32.mrb[0].mxu0
        %v453 = vadd.f32 %v352, %v452
        %v454 = vpop.f32.mrb[0].mxu0
        %455 = vmatprep.mubr.bf16.mxu0 0
        %456 = vmatmul.mubr.bf16.gmra.mrb[0].mxu0 %v397
        %v457 = vpop.f32.mrb[0].mxu0
        %v458 = vadd.f32 %v352, %v457
        %v459 = vpop.f32.mrb[0].mxu0
        %v460 = vpop.f32.mrb[0].mxu0
        %v461 = vadd.f32 %v352, %v460
        %v462 = vpop.f32.mrb[0].mxu0
        %463 = vdwg.mxu0
        %464 = vst [vmem:[#allocation3] sm:$0xff] %v434
        %465 = vst [vmem:[#allocation3 + $0x8] sm:$0xff] %v437
        %466 = vst [vmem:[#allocation3 + $0x10] sm:$0xff] %v442
        %467 = vst [vmem:[#allocation3 + $0x18] sm:$0xff] %v445
        %468 = vst [vmem:[#allocation3 + $0x20] sm:$0xff] %v450
        %469 = vst [vmem:[#allocation3 + $0x28] sm:$0xff] %v453
        %470 = vst [vmem:[#allocation3 + $0x30] sm:$0xff] %v458
        %471 = vst [vmem:[#allocation3 + $0x38] sm:$0xff] %v461
        %v472 = vld [vmem:[#allocation3] sm:$0xff]
        %v477 = vunpack.c.l.b16 %v335
        %v478 = vunpack.c.l.b16 %v336
        %v479 = vunpack.c.l.b16 %v337
        %v480 = vunpack.c.l.b16 %v338
        %v481 = vpack.c.b16 %v478, %v477
        %v482 = vpack.c.b16 %v480, %v479
        %v486 = vsel %vm386, 0, 0
        %488 = vmatprep.subr.bf16.mxu0 0
        %489 = vmatpush1.bf16.msra.mxu0 %v481
        %490 = vmatprep.subr.bf16.mxu0 0
        %491 = vmatpush1.bf16.msra.mxu0 %v482
        %492 = vmatprep.subr.bf16.mxu0 0
        %493 = vmatpush1.bf16.msra.mxu0 0
        %494 = vmatprep.subr.bf16.mxu0 0
        %495 = vmatpush1.bf16.msra.mxu0 0
        %496 = vmatprep.subr.bf16.mxu0 0
        %497 = vmatpush1.bf16.msra.mxu0 0
        %498 = vmatprep.subr.bf16.mxu0 0
        %499 = vmatpush1.bf16.msra.mxu0 0
        %500 = vmatprep.subr.bf16.mxu0 0
        %501 = vmatpush1.bf16.msra.mxu0 0
        %502 = vmatprep.subr.bf16.mxu0 0
        %503 = vmatpush1.bf16.msra.mxu0 0
        %504 = vmatprep.subr.bf16.mxu0 0
        %505 = vmatpush1.bf16.msra.mxu0 0
        %506 = vmatprep.subr.bf16.mxu0 0
        %507 = vmatpush1.bf16.msra.mxu0 0
        %508 = vmatprep.subr.bf16.mxu0 0
        %509 = vmatpush1.bf16.msra.mxu0 0
        %510 = vmatprep.subr.bf16.mxu0 0
        %511 = vmatpush1.bf16.msra.mxu0 0
        %512 = vmatprep.subr.bf16.mxu0 0
        %513 = vmatpush1.bf16.msra.mxu0 0
        %514 = vmatprep.subr.bf16.mxu0 0
        %515 = vmatpush1.bf16.msra.mxu0 0
        %516 = vmatprep.subr.bf16.mxu0 0
        %517 = vmatpush1.bf16.msra.mxu0 0
        %518 = vmatprep.subr.bf16.mxu0 0
        %519 = vmatpush1.bf16.msra.mxu0 0
        %520 = vmatprep.mubr.bf16.mxu0 0
        %521 = vmatmul.mubr.bf16.gmra.mrb[0].mxu0 %v486
        %v522 = vpop.f32.mrb[0].mxu0
        %v523 = vadd.f32 0.0, %v522
        %v524 = vpop.f32.mrb[0].mxu0
        %v525 = vpop.f32.mrb[0].mxu0
        %v526 = vpop.f32.mrb[0].mxu0
        %527 = vdwg.mxu0
        %v528 = vadd.f32 %v472, %v523
        %v529 = vxor.u32 %v528, 2147483648
        %v530 = vmul.f32 %v529, 1.442695
        %v531 = vpow.pop %v530
        %v532 = vadd.f32 %v531, 1.0
        %v533 = vrcp.pop %v532
        %v534 = vmul.f32 1.0, %v533
        %v535 = vtanh.pop %v528
        %v536 = vmul.f32 %v534, 0.0
        %538 = vrot.lane.b32.xlu0 %v535, 64
        %v539 = vpop.permute.xlu0 %538
        %v541 = vmul.f32 %v534, %v539
        %543 = vrot.lane.b32.xlu0 %v541, 32
        %v544 = vpop.permute.xlu0 %543
        %v546 = vadd.f32 %v536, %v544
        %v547 = vtanh.pop %v546
        %549 = vrot.lane.b32.xlu0 %v547, 64
        %v550 = vpop.permute.xlu0 %549
        %v552 = vmul.f32 %v534, %v550
        %vm553 = vcmp.gt.s32.totalorder %v330, 0
        %v554 = vsel %vm553, 1, 0
        %555 = vset.pattern.permute.xlu0 0
        %556 = vperm.xlu0 %555, %v554
        %v557 = vpop.permute.xlu0 %556
        %vm558 = vcmp.eq.s32.totalorder %v557, 1
        %v559 = vsel %vm558, %v552, 0.0
        %v560 = vsel %vm558, %v546, 0.0
        %v561 = vpack.c.bf16 %v559, %v559
        %v563 = vunpack.c.l.b16 %v561
        %v564 = vpack.c.b16 %v563, %v563
        %565 = vrot.lane.b32.xlu0 %v564, 32
        %v566 = vpop.permute.xlu0 %565
        %vm568 = vcmask 257024
        %569 = vst.msk [vmem:[#allocation2] sm:$0xf] %vm568, %v566
        %s570 = scalar_lea.vmem [#allocation3], 8
        %v571 = vld [vmem:[%s570] sm:$0xff]
        %572 = vrot.lane.b32.xlu0 %v561, 32
        %v573 = vpop.permute.xlu0 %572
        %v575 = vsel %vm386, %v573, 0
        %577 = vmatprep.subr.bf16.mxu0 0
        %578 = vmatpush1.bf16.msra.mxu0 %v481
        %579 = vmatprep.subr.bf16.mxu0 0
        %580 = vmatpush1.bf16.msra.mxu0 %v482
        %581 = vmatprep.subr.bf16.mxu0 0
        %582 = vmatpush1.bf16.msra.mxu0 0
        %583 = vmatprep.subr.bf16.mxu0 0
        %584 = vmatpush1.bf16.msra.mxu0 0
        %585 = vmatprep.subr.bf16.mxu0 0
        %586 = vmatpush1.bf16.msra.mxu0 0
        %587 = vmatprep.subr.bf16.mxu0 0
        %588 = vmatpush1.bf16.msra.mxu0 0
        %589 = vmatprep.subr.bf16.mxu0 0
        %590 = vmatpush1.bf16.msra.mxu0 0
        %591 = vmatprep.subr.bf16.mxu0 0
        %592 = vmatpush1.bf16.msra.mxu0 0
        %593 = vmatprep.subr.bf16.mxu0 0
        %594 = vmatpush1.bf16.msra.mxu0 0
        %595 = vmatprep.subr.bf16.mxu0 0
        %596 = vmatpush1.bf16.msra.mxu0 0
        %597 = vmatprep.subr.bf16.mxu0 0
        %598 = vmatpush1.bf16.msra.mxu0 0
        %599 = vmatprep.subr.bf16.mxu0 0
        %600 = vmatpush1.bf16.msra.mxu0 0
        %601 = vmatprep.subr.bf16.mxu0 0
        %602 = vmatpush1.bf16.msra.mxu0 0
        %603 = vmatprep.subr.bf16.mxu0 0
        %604 = vmatpush1.bf16.msra.mxu0 0
        %605 = vmatprep.subr.bf16.mxu0 0
        %606 = vmatpush1.bf16.msra.mxu0 0
        %607 = vmatprep.subr.bf16.mxu0 0
        %608 = vmatpush1.bf16.msra.mxu0 0
        %609 = vmatprep.mubr.bf16.mxu0 0
        %610 = vmatmul.mubr.bf16.gmra.mrb[0].mxu0 %v575
        %v611 = vpop.f32.mrb[0].mxu0
        %v612 = vadd.f32 0.0, %v611
        %v613 = vpop.f32.mrb[0].mxu0
        %v614 = vpop.f32.mrb[0].mxu0
        %v615 = vpop.f32.mrb[0].mxu0
        %616 = vdwg.mxu0
        %v617 = vadd.f32 %v571, %v612
        %v618 = vxor.u32 %v617, 2147483648
        %v619 = vmul.f32 %v618, 1.442695
        %v620 = vpow.pop %v619
        %v621 = vadd.f32 %v620, 1.0
        %v622 = vrcp.pop %v621
        %v623 = vmul.f32 1.0, %v622
        %v624 = vtanh.pop %v617
        %v625 = vmul.f32 %v623, %v560
        %627 = vrot.lane.b32.xlu0 %v624, 64
        %v628 = vpop.permute.xlu0 %627
        %v630 = vmul.f32 %v623, %v628
        %632 = vrot.lane.b32.xlu0 %v630, 32
        %v633 = vpop.permute.xlu0 %632
        %v635 = vadd.f32 %v625, %v633
        %v636 = vtanh.pop %v635
        %638 = vrot.lane.b32.xlu0 %v636, 64
        %v639 = vpop.permute.xlu0 %638
        %v641 = vmul.f32 %v623, %v639
        %vm642 = vcmp.gt.s32.totalorder %v330, 1
        %v643 = vsel %vm642, 1, 0
        %644 = vset.pattern.permute.xlu0 0
        %645 = vperm.xlu0 %644, %v643
        %v646 = vpop.permute.xlu0 %645
        %vm647 = vcmp.eq.s32.totalorder %v646, 1
        %v648 = vsel %vm647, %v641, %v559
        %v649 = vsel %vm647, %v635, %v560
        %v650 = vpack.c.bf16 %v648, %v648
        %v652 = vunpack.c.l.b16 %v650
        %v653 = vpack.c.b16 %v652, %v652
        %654 = vrot.lane.b32.xlu0 %v653, 32
        %v655 = vpop.permute.xlu0 %654
        %s657 = scalar_lea.vmem [#allocation2], 4
        %658 = vst.msk [vmem:[%s657] sm:$0xf] %vm568, %v655
        %s659 = scalar_lea.vmem [#allocation3], 16
        %v660 = vld [vmem:[%s659] sm:$0xff]
        %661 = vrot.lane.b32.xlu0 %v650, 32
        %v662 = vpop.permute.xlu0 %661
        %v664 = vsel %vm386, %v662, 0
        %666 = vmatprep.subr.bf16.mxu0 0
        %667 = vmatpush1.bf16.msra.mxu0 %v481
        %668 = vmatprep.subr.bf16.mxu0 0
        %669 = vmatpush1.bf16.msra.mxu0 %v482
        %670 = vmatprep.subr.bf16.mxu0 0
        %671 = vmatpush1.bf16.msra.mxu0 0
        %672 = vmatprep.subr.bf16.mxu0 0
        %673 = vmatpush1.bf16.msra.mxu0 0
        %674 = vmatprep.subr.bf16.mxu0 0
        %675 = vmatpush1.bf16.msra.mxu0 0
        %676 = vmatprep.subr.bf16.mxu0 0
        %677 = vmatpush1.bf16.msra.mxu0 0
        %678 = vmatprep.subr.bf16.mxu0 0
        %679 = vmatpush1.bf16.msra.mxu0 0
        %680 = vmatprep.subr.bf16.mxu0 0
        %681 = vmatpush1.bf16.msra.mxu0 0
        %682 = vmatprep.subr.bf16.mxu0 0
        %683 = vmatpush1.bf16.msra.mxu0 0
        %684 = vmatprep.subr.bf16.mxu0 0
        %685 = vmatpush1.bf16.msra.mxu0 0
        %686 = vmatprep.subr.bf16.mxu0 0
        %687 = vmatpush1.bf16.msra.mxu0 0
        %688 = vmatprep.subr.bf16.mxu0 0
        %689 = vmatpush1.bf16.msra.mxu0 0
        %690 = vmatprep.subr.bf16.mxu0 0
        %691 = vmatpush1.bf16.msra.mxu0 0
        %692 = vmatprep.subr.bf16.mxu0 0
        %693 = vmatpush1.bf16.msra.mxu0 0
        %694 = vmatprep.subr.bf16.mxu0 0
        %695 = vmatpush1.bf16.msra.mxu0 0
        %696 = vmatprep.subr.bf16.mxu0 0
        %697 = vmatpush1.bf16.msra.mxu0 0
        %698 = vmatprep.mubr.bf16.mxu0 0
        %699 = vmatmul.mubr.bf16.gmra.mrb[0].mxu0 %v664
        %v700 = vpop.f32.mrb[0].mxu0
        %v701 = vadd.f32 0.0, %v700
        %v702 = vpop.f32.mrb[0].mxu0
        %v703 = vpop.f32.mrb[0].mxu0
        %v704 = vpop.f32.mrb[0].mxu0
        %705 = vdwg.mxu0
        %v706 = vadd.f32 %v660, %v701
        %v707 = vxor.u32 %v706, 2147483648
        %v708 = vmul.f32 %v707, 1.442695
        %v709 = vpow.pop %v708
        %v710 = vadd.f32 %v709, 1.0
        %v711 = vrcp.pop %v710
        %v712 = vmul.f32 1.0, %v711
        %v713 = vtanh.pop %v706
        %v714 = vmul.f32 %v712, %v649
        %716 = vrot.lane.b32.xlu0 %v713, 64
        %v717 = vpop.permute.xlu0 %716
        %v719 = vmul.f32 %v712, %v717
        %721 = vrot.lane.b32.xlu0 %v719, 32
        %v722 = vpop.permute.xlu0 %721
        %v724 = vadd.f32 %v714, %v722
        %v725 = vtanh.pop %v724
        %727 = vrot.lane.b32.xlu0 %v725, 64
        %v728 = vpop.permute.xlu0 %727
        %v730 = vmul.f32 %v712, %v728
        %vm731 = vcmp.gt.s32.totalorder %v330, 2
        %v732 = vsel %vm731, 1, 0
        %733 = vset.pattern.permute.xlu0 0
        %734 = vperm.xlu0 %733, %v732
        %v735 = vpop.permute.xlu0 %734
        %vm736 = vcmp.eq.s32.totalorder %v735, 1
        %v737 = vsel %vm736, %v730, %v648
        %v738 = vsel %vm736, %v724, %v649
        %v739 = vpack.c.bf16 %v737, %v737
        %v741 = vunpack.c.l.b16 %v739
        %v742 = vpack.c.b16 %v741, %v741
        %743 = vrot.lane.b32.xlu0 %v742, 32
        %v744 = vpop.permute.xlu0 %743
        %s746 = scalar_lea.vmem [#allocation2], 8
        %747 = vst.msk [vmem:[%s746] sm:$0xf] %vm568, %v744
        %s748 = scalar_lea.vmem [#allocation3], 24
        %v749 = vld [vmem:[%s748] sm:$0xff]
        %750 = vrot.lane.b32.xlu0 %v739, 32
        %v751 = vpop.permute.xlu0 %750
        %v753 = vsel %vm386, %v751, 0
        %755 = vmatprep.subr.bf16.mxu0 0
        %756 = vmatpush1.bf16.msra.mxu0 %v481
        %757 = vmatprep.subr.bf16.mxu0 0
        %758 = vmatpush1.bf16.msra.mxu0 %v482
        %759 = vmatprep.subr.bf16.mxu0 0
        %760 = vmatpush1.bf16.msra.mxu0 0
        %761 = vmatprep.subr.bf16.mxu0 0
        %762 = vmatpush1.bf16.msra.mxu0 0
        %763 = vmatprep.subr.bf16.mxu0 0
        %764 = vmatpush1.bf16.msra.mxu0 0
        %765 = vmatprep.subr.bf16.mxu0 0
        %766 = vmatpush1.bf16.msra.mxu0 0
        %767 = vmatprep.subr.bf16.mxu0 0
        %768 = vmatpush1.bf16.msra.mxu0 0
        %769 = vmatprep.subr.bf16.mxu0 0
        %770 = vmatpush1.bf16.msra.mxu0 0
        %771 = vmatprep.subr.bf16.mxu0 0
        %772 = vmatpush1.bf16.msra.mxu0 0
        %773 = vmatprep.subr.bf16.mxu0 0
        %774 = vmatpush1.bf16.msra.mxu0 0
        %775 = vmatprep.subr.bf16.mxu0 0
        %776 = vmatpush1.bf16.msra.mxu0 0
        %777 = vmatprep.subr.bf16.mxu0 0
        %778 = vmatpush1.bf16.msra.mxu0 0
        %779 = vmatprep.subr.bf16.mxu0 0
        %780 = vmatpush1.bf16.msra.mxu0 0
        %781 = vmatprep.subr.bf16.mxu0 0
        %782 = vmatpush1.bf16.msra.mxu0 0
        %783 = vmatprep.subr.bf16.mxu0 0
        %784 = vmatpush1.bf16.msra.mxu0 0
        %785 = vmatprep.subr.bf16.mxu0 0
        %786 = vmatpush1.bf16.msra.mxu0 0
        %787 = vmatprep.mubr.bf16.mxu0 0
        %788 = vmatmul.mubr.bf16.gmra.mrb[0].mxu0 %v753
        %v789 = vpop.f32.mrb[0].mxu0
        %v790 = vadd.f32 0.0, %v789
        %v791 = vpop.f32.mrb[0].mxu0
        %v792 = vpop.f32.mrb[0].mxu0
        %v793 = vpop.f32.mrb[0].mxu0
        %794 = vdwg.mxu0
        %v795 = vadd.f32 %v749, %v790
        %v796 = vxor.u32 %v795, 2147483648
        %v797 = vmul.f32 %v796, 1.442695
        %v798 = vpow.pop %v797
        %v799 = vadd.f32 %v798, 1.0
        %v800 = vrcp.pop %v799
        %v801 = vmul.f32 1.0, %v800
        %v802 = vtanh.pop %v795
        %v803 = vmul.f32 %v801, %v738
        %805 = vrot.lane.b32.xlu0 %v802, 64
        %v806 = vpop.permute.xlu0 %805
        %v808 = vmul.f32 %v801, %v806
        %810 = vrot.lane.b32.xlu0 %v808, 32
        %v811 = vpop.permute.xlu0 %810
        %v813 = vadd.f32 %v803, %v811
        %v814 = vtanh.pop %v813
        %816 = vrot.lane.b32.xlu0 %v814, 64
        %v817 = vpop.permute.xlu0 %816
        %v819 = vmul.f32 %v801, %v817
        %vm820 = vcmp.gt.s32.totalorder %v330, 3
        %v821 = vsel %vm820, 1, 0
        %822 = vset.pattern.permute.xlu0 0
        %823 = vperm.xlu0 %822, %v821
        %v824 = vpop.permute.xlu0 %823
        %vm825 = vcmp.eq.s32.totalorder %v824, 1
        %v826 = vsel %vm825, %v819, %v737
        %v827 = vsel %vm825, %v813, %v738
        %v828 = vpack.c.bf16 %v826, %v826
        %v830 = vunpack.c.l.b16 %v828
        %v831 = vpack.c.b16 %v830, %v830
        %832 = vrot.lane.b32.xlu0 %v831, 32
        %v833 = vpop.permute.xlu0 %832
        %s835 = scalar_lea.vmem [#allocation2], 12
        %836 = vst.msk [vmem:[%s835] sm:$0xf] %vm568, %v833
        %s837 = scalar_lea.vmem [#allocation3], 32
        %v838 = vld [vmem:[%s837] sm:$0xff]
        %839 = vrot.lane.b32.xlu0 %v828, 32
        %v840 = vpop.permute.xlu0 %839
        %v842 = vsel %vm386, %v840, 0
        %844 = vmatprep.subr.bf16.mxu0 0
        %845 = vmatpush1.bf16.msra.mxu0 %v481
        %846 = vmatprep.subr.bf16.mxu0 0
        %847 = vmatpush1.bf16.msra.mxu0 %v482
        %848 = vmatprep.subr.bf16.mxu0 0
        %849 = vmatpush1.bf16.msra.mxu0 0
        %850 = vmatprep.subr.bf16.mxu0 0
        %851 = vmatpush1.bf16.msra.mxu0 0
        %852 = vmatprep.subr.bf16.mxu0 0
        %853 = vmatpush1.bf16.msra.mxu0 0
        %854 = vmatprep.subr.bf16.mxu0 0
        %855 = vmatpush1.bf16.msra.mxu0 0
        %856 = vmatprep.subr.bf16.mxu0 0
        %857 = vmatpush1.bf16.msra.mxu0 0
        %858 = vmatprep.subr.bf16.mxu0 0
        %859 = vmatpush1.bf16.msra.mxu0 0
        %860 = vmatprep.subr.bf16.mxu0 0
        %861 = vmatpush1.bf16.msra.mxu0 0
        %862 = vmatprep.subr.bf16.mxu0 0
        %863 = vmatpush1.bf16.msra.mxu0 0
        %864 = vmatprep.subr.bf16.mxu0 0
        %865 = vmatpush1.bf16.msra.mxu0 0
        %866 = vmatprep.subr.bf16.mxu0 0
        %867 = vmatpush1.bf16.msra.mxu0 0
        %868 = vmatprep.subr.bf16.mxu0 0
        %869 = vmatpush1.bf16.msra.mxu0 0
        %870 = vmatprep.subr.bf16.mxu0 0
        %871 = vmatpush1.bf16.msra.mxu0 0
        %872 = vmatprep.subr.bf16.mxu0 0
        %873 = vmatpush1.bf16.msra.mxu0 0
        %874 = vmatprep.subr.bf16.mxu0 0
        %875 = vmatpush1.bf16.msra.mxu0 0
        %876 = vmatprep.mubr.bf16.mxu0 0
        %877 = vmatmul.mubr.bf16.gmra.mrb[0].mxu0 %v842
        %v878 = vpop.f32.mrb[0].mxu0
        %v879 = vadd.f32 0.0, %v878
        %v880 = vpop.f32.mrb[0].mxu0
        %v881 = vpop.f32.mrb[0].mxu0
        %v882 = vpop.f32.mrb[0].mxu0
        %883 = vdwg.mxu0
        %v884 = vadd.f32 %v838, %v879
        %v885 = vxor.u32 %v884, 2147483648
        %v886 = vmul.f32 %v885, 1.442695
        %v887 = vpow.pop %v886
        %v888 = vadd.f32 %v887, 1.0
        %v889 = vrcp.pop %v888
        %v890 = vmul.f32 1.0, %v889
        %v891 = vtanh.pop %v884
        %v892 = vmul.f32 %v890, %v827
        %894 = vrot.lane.b32.xlu0 %v891, 64
        %v895 = vpop.permute.xlu0 %894
        %v897 = vmul.f32 %v890, %v895
        %899 = vrot.lane.b32.xlu0 %v897, 32
        %v900 = vpop.permute.xlu0 %899
        %v902 = vadd.f32 %v892, %v900
        %v903 = vtanh.pop %v902
        %905 = vrot.lane.b32.xlu0 %v903, 64
        %v906 = vpop.permute.xlu0 %905
        %v908 = vmul.f32 %v890, %v906
        %vm909 = vcmp.gt.s32.totalorder %v330, 4
        %v910 = vsel %vm909, 1, 0
        %911 = vset.pattern.permute.xlu0 0
        %912 = vperm.xlu0 %911, %v910
        %v913 = vpop.permute.xlu0 %912
        %vm914 = vcmp.eq.s32.totalorder %v913, 1
        %v915 = vsel %vm914, %v908, %v826
        %v916 = vsel %vm914, %v902, %v827
        %v917 = vpack.c.bf16 %v915, %v915
        %v919 = vunpack.c.l.b16 %v917
        %v920 = vpack.c.b16 %v919, %v919
        %921 = vrot.lane.b32.xlu0 %v920, 32
        %v922 = vpop.permute.xlu0 %921
        %s924 = scalar_lea.vmem [#allocation2], 16
        %925 = vst.msk [vmem:[%s924] sm:$0xf] %vm568, %v922
        %s926 = scalar_lea.vmem [#allocation3], 40
        %v927 = vld [vmem:[%s926] sm:$0xff]
        %928 = vrot.lane.b32.xlu0 %v917, 32
        %v929 = vpop.permute.xlu0 %928
        %v931 = vsel %vm386, %v929, 0
        %933 = vmatprep.subr.bf16.mxu0 0
        %934 = vmatpush1.bf16.msra.mxu0 %v481
        %935 = vmatprep.subr.bf16.mxu0 0
        %936 = vmatpush1.bf16.msra.mxu0 %v482
        %937 = vmatprep.subr.bf16.mxu0 0
        %938 = vmatpush1.bf16.msra.mxu0 0
        %939 = vmatprep.subr.bf16.mxu0 0
        %940 = vmatpush1.bf16.msra.mxu0 0
        %941 = vmatprep.subr.bf16.mxu0 0
        %942 = vmatpush1.bf16.msra.mxu0 0
        %943 = vmatprep.subr.bf16.mxu0 0
        %944 = vmatpush1.bf16.msra.mxu0 0
        %945 = vmatprep.subr.bf16.mxu0 0
        %946 = vmatpush1.bf16.msra.mxu0 0
        %947 = vmatprep.subr.bf16.mxu0 0
        %948 = vmatpush1.bf16.msra.mxu0 0
        %949 = vmatprep.subr.bf16.mxu0 0
        %950 = vmatpush1.bf16.msra.mxu0 0
        %951 = vmatprep.subr.bf16.mxu0 0
        %952 = vmatpush1.bf16.msra.mxu0 0
        %953 = vmatprep.subr.bf16.mxu0 0
        %954 = vmatpush1.bf16.msra.mxu0 0
        %955 = vmatprep.subr.bf16.mxu0 0
        %956 = vmatpush1.bf16.msra.mxu0 0
        %957 = vmatprep.subr.bf16.mxu0 0
        %958 = vmatpush1.bf16.msra.mxu0 0
        %959 = vmatprep.subr.bf16.mxu0 0
        %960 = vmatpush1.bf16.msra.mxu0 0
        %961 = vmatprep.subr.bf16.mxu0 0
        %962 = vmatpush1.bf16.msra.mxu0 0
        %963 = vmatprep.subr.bf16.mxu0 0
        %964 = vmatpush1.bf16.msra.mxu0 0
        %965 = vmatprep.mubr.bf16.mxu0 0
        %966 = vmatmul.mubr.bf16.gmra.mrb[0].mxu0 %v931
        %v967 = vpop.f32.mrb[0].mxu0
        %v968 = vadd.f32 0.0, %v967
        %v969 = vpop.f32.mrb[0].mxu0
        %v970 = vpop.f32.mrb[0].mxu0
        %v971 = vpop.f32.mrb[0].mxu0
        %972 = vdwg.mxu0
        %v973 = vadd.f32 %v927, %v968
        %v974 = vxor.u32 %v973, 2147483648
        %v975 = vmul.f32 %v974, 1.442695
        %v976 = vpow.pop %v975
        %v977 = vadd.f32 %v976, 1.0
        %v978 = vrcp.pop %v977
        %v979 = vmul.f32 1.0, %v978
        %v980 = vtanh.pop %v973
        %v981 = vmul.f32 %v979, %v916
        %983 = vrot.lane.b32.xlu0 %v980, 64
        %v984 = vpop.permute.xlu0 %983
        %v986 = vmul.f32 %v979, %v984
        %988 = vrot.lane.b32.xlu0 %v986, 32
        %v989 = vpop.permute.xlu0 %988
        %v991 = vadd.f32 %v981, %v989
        %v992 = vtanh.pop %v991
        %994 = vrot.lane.b32.xlu0 %v992, 64
        %v995 = vpop.permute.xlu0 %994
        %v997 = vmul.f32 %v979, %v995
        %vm998 = vcmp.gt.s32.totalorder %v330, 5
        %v999 = vsel %vm998, 1, 0
        %1000 = vset.pattern.permute.xlu0 0
        %1001 = vperm.xlu0 %1000, %v999
        %v1002 = vpop.permute.xlu0 %1001
        %vm1003 = vcmp.eq.s32.totalorder %v1002, 1
        %v1004 = vsel %vm1003, %v997, %v915
        %v1005 = vsel %vm1003, %v991, %v916
        %v1006 = vpack.c.bf16 %v1004, %v1004
        %v1008 = vunpack.c.l.b16 %v1006
        %v1009 = vpack.c.b16 %v1008, %v1008
        %1010 = vrot.lane.b32.xlu0 %v1009, 32
        %v1011 = vpop.permute.xlu0 %1010
        %s1013 = scalar_lea.vmem [#allocation2], 20
        %1014 = vst.msk [vmem:[%s1013] sm:$0xf] %vm568, %v1011
        %s1015 = scalar_lea.vmem [#allocation3], 48
        %v1016 = vld [vmem:[%s1015] sm:$0xff]
        %1017 = vrot.lane.b32.xlu0 %v1006, 32
        %v1018 = vpop.permute.xlu0 %1017
        %v1020 = vsel %vm386, %v1018, 0
        %1022 = vmatprep.subr.bf16.mxu0 0
        %1023 = vmatpush1.bf16.msra.mxu0 %v481
        %1024 = vmatprep.subr.bf16.mxu0 0
        %1025 = vmatpush1.bf16.msra.mxu0 %v482
        %1026 = vmatprep.subr.bf16.mxu0 0
        %1027 = vmatpush1.bf16.msra.mxu0 0
        %1028 = vmatprep.subr.bf16.mxu0 0
        %1029 = vmatpush1.bf16.msra.mxu0 0
        %1030 = vmatprep.subr.bf16.mxu0 0
        %1031 = vmatpush1.bf16.msra.mxu0 0
        %1032 = vmatprep.subr.bf16.mxu0 0
        %1033 = vmatpush1.bf16.msra.mxu0 0
        %1034 = vmatprep.subr.bf16.mxu0 0
        %1035 = vmatpush1.bf16.msra.mxu0 0
        %1036 = vmatprep.subr.bf16.mxu0 0
        %1037 = vmatpush1.bf16.msra.mxu0 0
        %1038 = vmatprep.subr.bf16.mxu0 0
        %1039 = vmatpush1.bf16.msra.mxu0 0
        %1040 = vmatprep.subr.bf16.mxu0 0
        %1041 = vmatpush1.bf16.msra.mxu0 0
        %1042 = vmatprep.subr.bf16.mxu0 0
        %1043 = vmatpush1.bf16.msra.mxu0 0
        %1044 = vmatprep.subr.bf16.mxu0 0
        %1045 = vmatpush1.bf16.msra.mxu0 0
        %1046 = vmatprep.subr.bf16.mxu0 0
        %1047 = vmatpush1.bf16.msra.mxu0 0
        %1048 = vmatprep.subr.bf16.mxu0 0
        %1049 = vmatpush1.bf16.msra.mxu0 0
        %1050 = vmatprep.subr.bf16.mxu0 0
        %1051 = vmatpush1.bf16.msra.mxu0 0
        %1052 = vmatprep.subr.bf16.mxu0 0
        %1053 = vmatpush1.bf16.msra.mxu0 0
        %1054 = vmatprep.mubr.bf16.mxu0 0
        %1055 = vmatmul.mubr.bf16.gmra.mrb[0].mxu0 %v1020
        %v1056 = vpop.f32.mrb[0].mxu0
        %v1057 = vadd.f32 0.0, %v1056
        %v1058 = vpop.f32.mrb[0].mxu0
        %v1059 = vpop.f32.mrb[0].mxu0
        %v1060 = vpop.f32.mrb[0].mxu0
        %1061 = vdwg.mxu0
        %v1062 = vadd.f32 %v1016, %v1057
        %v1063 = vxor.u32 %v1062, 2147483648
        %v1064 = vmul.f32 %v1063, 1.442695
        %v1065 = vpow.pop %v1064
        %v1066 = vadd.f32 %v1065, 1.0
        %v1067 = vrcp.pop %v1066
        %v1068 = vmul.f32 1.0, %v1067
        %v1069 = vtanh.pop %v1062
        %v1070 = vmul.f32 %v1068, %v1005
        %1072 = vrot.lane.b32.xlu0 %v1069, 64
        %v1073 = vpop.permute.xlu0 %1072
        %v1075 = vmul.f32 %v1068, %v1073
        %1077 = vrot.lane.b32.xlu0 %v1075, 32
        %v1078 = vpop.permute.xlu0 %1077
        %v1080 = vadd.f32 %v1070, %v1078
        %v1081 = vtanh.pop %v1080
        %1083 = vrot.lane.b32.xlu0 %v1081, 64
        %v1084 = vpop.permute.xlu0 %1083
        %v1086 = vmul.f32 %v1068, %v1084
        %vm1087 = vcmp.gt.s32.totalorder %v330, 6
        %v1088 = vsel %vm1087, 1, 0
        %1089 = vset.pattern.permute.xlu0 0
        %1090 = vperm.xlu0 %1089, %v1088
        %v1091 = vpop.permute.xlu0 %1090
        %vm1092 = vcmp.eq.s32.totalorder %v1091, 1
        %v1093 = vsel %vm1092, %v1086, %v1004
        %v1094 = vsel %vm1092, %v1080, %v1005
        %v1095 = vpack.c.bf16 %v1093, %v1093
        %v1097 = vunpack.c.l.b16 %v1095
        %v1098 = vpack.c.b16 %v1097, %v1097
        %1099 = vrot.lane.b32.xlu0 %v1098, 32
        %v1100 = vpop.permute.xlu0 %1099
        %s1102 = scalar_lea.vmem [#allocation2], 24
        %1103 = vst.msk [vmem:[%s1102] sm:$0xf] %vm568, %v1100
        %s1104 = scalar_lea.vmem [#allocation3], 56
        %v1105 = vld [vmem:[%s1104] sm:$0xff]
        %1106 = vrot.lane.b32.xlu0 %v1095, 32
        %v1107 = vpop.permute.xlu0 %1106
        %v1109 = vsel %vm386, %v1107, 0
        %1111 = vmatprep.subr.bf16.mxu0 0
        %1112 = vmatpush1.bf16.msra.mxu0 %v481
        %1113 = vmatprep.subr.bf16.mxu0 0
        %1114 = vmatpush1.bf16.msra.mxu0 %v482
        %1115 = vmatprep.subr.bf16.mxu0 0
        %1116 = vmatpush1.bf16.msra.mxu0 0
        %1117 = vmatprep.subr.bf16.mxu0 0
        %1118 = vmatpush1.bf16.msra.mxu0 0
        %1119 = vmatprep.subr.bf16.mxu0 0
        %1120 = vmatpush1.bf16.msra.mxu0 0
        %1121 = vmatprep.subr.bf16.mxu0 0
        %1122 = vmatpush1.bf16.msra.mxu0 0
        %1123 = vmatprep.subr.bf16.mxu0 0
        %1124 = vmatpush1.bf16.msra.mxu0 0
        %1125 = vmatprep.subr.bf16.mxu0 0
        %1126 = vmatpush1.bf16.msra.mxu0 0
        %1127 = vmatprep.subr.bf16.mxu0 0
        %1128 = vmatpush1.bf16.msra.mxu0 0
        %1129 = vmatprep.subr.bf16.mxu0 0
        %1130 = vmatpush1.bf16.msra.mxu0 0
        %1131 = vmatprep.subr.bf16.mxu0 0
        %1132 = vmatpush1.bf16.msra.mxu0 0
        %1133 = vmatprep.subr.bf16.mxu0 0
        %1134 = vmatpush1.bf16.msra.mxu0 0
        %1135 = vmatprep.subr.bf16.mxu0 0
        %1136 = vmatpush1.bf16.msra.mxu0 0
        %1137 = vmatprep.subr.bf16.mxu0 0
        %1138 = vmatpush1.bf16.msra.mxu0 0
        %1139 = vmatprep.subr.bf16.mxu0 0
        %1140 = vmatpush1.bf16.msra.mxu0 0
        %1141 = vmatprep.subr.bf16.mxu0 0
        %1142 = vmatpush1.bf16.msra.mxu0 0
        %1143 = vmatprep.mubr.bf16.mxu0 0
        %1144 = vmatmul.mubr.bf16.gmra.mrb[0].mxu0 %v1109
        %v1145 = vpop.f32.mrb[0].mxu0
        %v1146 = vadd.f32 0.0, %v1145
        %v1147 = vpop.f32.mrb[0].mxu0
        %v1148 = vpop.f32.mrb[0].mxu0
        %v1149 = vpop.f32.mrb[0].mxu0
        %1150 = vdwg.mxu0
        %v1151 = vadd.f32 %v1105, %v1146
        %v1152 = vxor.u32 %v1151, 2147483648
        %v1153 = vmul.f32 %v1152, 1.442695
        %v1154 = vpow.pop %v1153
        %v1155 = vadd.f32 %v1154, 1.0
        %v1156 = vrcp.pop %v1155
        %v1157 = vmul.f32 1.0, %v1156
        %v1158 = vtanh.pop %v1151
        %v1159 = vmul.f32 %v1157, %v1094
        %1161 = vrot.lane.b32.xlu0 %v1158, 64
        %v1162 = vpop.permute.xlu0 %1161
        %v1164 = vmul.f32 %v1157, %v1162
        %1166 = vrot.lane.b32.xlu0 %v1164, 32
        %v1167 = vpop.permute.xlu0 %1166
        %v1169 = vadd.f32 %v1159, %v1167
        %v1170 = vtanh.pop %v1169
        %1172 = vrot.lane.b32.xlu0 %v1170, 64
        %v1173 = vpop.permute.xlu0 %1172
        %v1175 = vmul.f32 %v1157, %v1173
        %vm1176 = vcmp.gt.s32.totalorder %v330, 7
        %v1177 = vsel %vm1176, 1, 0
        %1178 = vset.pattern.permute.xlu0 0
        %1179 = vperm.xlu0 %1178, %v1177
        %v1180 = vpop.permute.xlu0 %1179
        %vm1181 = vcmp.eq.s32.totalorder %v1180, 1
        %v1182 = vsel %vm1181, %v1175, %v1093
        %v1183 = vsel %vm1181, %v1169, %v1094
        %v1184 = vpack.c.bf16 %v1182, %v1182
        %v1186 = vunpack.c.l.b16 %v1184
        %v1187 = vpack.c.b16 %v1186, %v1186
        %1188 = vrot.lane.b32.xlu0 %v1187, 32
        %v1189 = vpop.permute.xlu0 %1188
        %s1191 = scalar_lea.vmem [#allocation2], 28
        %1192 = vst.msk [vmem:[%s1191] sm:$0xf] %vm568, %v1189
        %1194 = vrot.lane.b32.xlu0 %v1182, 32
        %v1195 = vpop.permute.xlu0 %1194
        %1197 = vst.msk [vmem:[%s298] sm:$0xff] %vm386, %v1195
        %1199 = vrot.lane.b32.xlu0 %v1183, 96
        %v1200 = vpop.permute.xlu0 %1199
        %1202 = vst.msk [vmem:[%s305] sm:$0xff] %vm386, %v1200
        %s1203 = sand.u32 %s137, 1
        %s1204 = scalar_lea.sflag [#allocation7], %s1203
        %s1205 = sand.u32 %s137, 1
        %s1206 = smul.addr %s1205, 8
        %s1207 = scalar_lea.vmem [#allocation10], %s1206
        %s1208 = sand.u32 %s163, 1
        %s1209 = scalar_lea.sflag [#allocation12], %s1208
        %s1210 = sand.u32 %s163, 1
        %s1211 = smul.addr %s1210, 8
        %s1212 = scalar_lea.vmem [#allocation11], %s1211
        // Predicated region
        $region53: #{tpu_custom_call.1} parent=35 // pred_check
          %p1213 = pneg %p147
        $region54: #{tpu_custom_call.1} parent=35 // pred_check_branch
          %1215 = sbr.rel (%p1213) target = $region56
        $region55: #{tpu_custom_call.1} parent=35 // pred_region
          %s1217 = ssub.s32 128, 128
          %1218 = vsyncadd %s1204, %s1217
          %s1219 = smul.addr %s30, 128
          %s1220 = scalar_lea.hbm %s5, %s1219
          %s1222 = sshll.u32 %s1207, 4
          %s1223 = int_to_ptr.vmem [resolvable:$true] %s1222
          %1225 = dma.vmem_to_hbm [thread:$0]  %s1223, 128, %s1220, %s1204
        $region56: #{tpu_custom_call.1} parent=35 // pred_fallthru
          _
        // Predicated region
        $region57: #{tpu_custom_call.1} parent=35 // pred_check
          %p1226 = pneg %p173
        $region58: #{tpu_custom_call.1} parent=35 // pred_check_branch
          %1228 = sbr.rel (%p1226) target = $region60
        $region59: #{tpu_custom_call.1} parent=35 // pred_region
          %s1230 = ssub.s32 128, 128
          %1231 = vsyncadd %s1209, %s1230
          %s1232 = smul.addr %s30, 128
          %s1233 = scalar_lea.hbm %s6, %s1232
          %s1235 = sshll.u32 %s1212, 4
          %s1236 = int_to_ptr.vmem [resolvable:$true] %s1235
          %1238 = dma.vmem_to_hbm [thread:$0]  %s1236, 128, %s1233, %s1209
        $region60: #{tpu_custom_call.1} parent=35 // pred_fallthru
          _
      $region36: #{tpu_custom_call.1} parent=5 // pred_fallthru
        _
      %p1239 = scmp.le.s32.totalorder 2, %s25
      // Predicated region
      $region61: #{tpu_custom_call.1} parent=5 // pred_check
        %p1240 = pneg %p1239
      $region62: #{tpu_custom_call.1} parent=5 // pred_check_branch
        %1242 = sbr.rel (%p1240) target = $region64
      $region63: #{tpu_custom_call.1} parent=5 // pred_region
        %s1243 = ssub.s32 %s25, 2
        // Predicated region
        $region65: #{tpu_custom_call.1} parent=63 // pred_check
          %p1244 = pneg %p153
        $region66: #{tpu_custom_call.1} parent=63 // pred_check_branch
          %1246 = sbr.rel (%p1244) target = $region68
        $region67: #{tpu_custom_call.1} parent=63 // pred_region
          %s1247 = sand.u32 %s138, 1
          %s1248 = scalar_lea.sflag [#allocation7], %s1247
          %s1249 = sand.u32 %s138, 1
          %s1250 = smul.addr %s1249, 8
          %s1251 = scalar_lea.vmem [#allocation10], %s1250
          %1252 = dma.done %s1248, 128
        $region68: #{tpu_custom_call.1} parent=63 // pred_fallthru
          _
        // Predicated region
        $region69: #{tpu_custom_call.1} parent=63 // pred_check
          %p1253 = pneg %p179
        $region70: #{tpu_custom_call.1} parent=63 // pred_check_branch
          %1255 = sbr.rel (%p1253) target = $region72
        $region71: #{tpu_custom_call.1} parent=63 // pred_region
          %s1256 = sand.u32 %s164, 1
          %s1257 = scalar_lea.sflag [#allocation12], %s1256
          %s1258 = sand.u32 %s164, 1
          %s1259 = smul.addr %s1258, 8
          %s1260 = scalar_lea.vmem [#allocation11], %s1259
          %1261 = dma.done %s1257, 128
        $region72: #{tpu_custom_call.1} parent=63 // pred_fallthru
          _
      $region64: #{tpu_custom_call.1} parent=5 // pred_fallthru
        _
    $region6: #{tpu_custom_call.1} parent=1 // loop_footer
      %s29 = sadd.s32 1, %s25
    $region7: #{tpu_custom_call.1} parent=1 // loop_footer_branch
      %24 = sbr.rel target = $region3
    $region8: #{tpu_custom_call.1} parent=1 // loop_exit
      _
    %1262 = vsyncpa [#allocation6], 1
    %s1263 = scalar_lea.sflag [#allocation6], 1
    %1264 = vsyncpa %s1263, 1
    %1265 = vsyncpa [#allocation9], 1
    %s1266 = scalar_lea.sflag [#allocation9], 1
    %1267 = vsyncpa %s1266, 1
    %1268 = vsyncpa [#allocation7], 1
    %s1269 = scalar_lea.sflag [#allocation7], 1
    %1270 = vsyncpa %s1269, 1
    %1271 = vsyncpa [#allocation12], 1
    %s1272 = scalar_lea.sflag [#allocation12], 1
    %1273 = vsyncpa %s1272, 1
  %1274 = vsyncmov [#allocation4]
  %s1275 = vpop.sfrf %1274
  %p1276 = scmp.eq.s32.totalorder %s1275, 0
  %p1277 = pneg %p1276
  %1279 = shalt.err (%p1277)

</llo_original>
